<compile_context>
chip_gen: v7x
topology: tpu7x:2x2x1
jax: 0.10.0
libtpu: 0.0.40
codegen_flags: <defaults>
</compile_context>

<pallas_src>
import functools

import numpy as np
import jax
import jax.numpy as jnp
from jax import lax
from jax.experimental import pallas as pl
from jax.experimental.pallas import tpu as pltpu

EPS = 1e-5


def residual_block_kernel(x_ref, mask_ref, w1_ref, g1_ref, be1_ref,
                          w2_ref, g2_ref, be2_ref,
                          out_ref,
                          s1_ref, q1_ref, s2_ref, q2_ref, patch_ref,
                          *, H, W, n_batch):
    phase = pl.program_id(0)          # 0: bn1 stats, 1: bn2 stats, 2: finalize
    n = pl.program_id(1)              # batch tile index
    C = x_ref.shape[1]
    HW = H * W
    count = float(n_batch * HW)       # elements per channel for BN stats

    # lane shift of the flattened (y*W + x) spatial axis for each of the 9 taps
    shifts = tuple((ky - 1) * W + (kx - 1) for ky in range(3) for kx in range(3))

    def conv3x3(src, w_ref):
        # src: (C, HW) channel-major tile.  Builds the transposed im2col matrix
        # (9*C, HW) in patch_ref via masked, lane-shifted window stores, then
        # does ONE fused MXU matmul (C, 9*C) @ (9*C, HW).
        # NOTE: bias intentionally omitted (cancelled by BN mean subtraction).
        for t, s in enumerate(shifts):
            lo = max(0, -s)               # first output position with valid src
            src0 = max(0, s)              # matching source position
            L = HW - abs(s)               # overlap length (never wraps)
            vals = src[:, src0:src0 + L] * mask_ref[pl.ds(t, 1), pl.ds(lo, L)]
            patch_ref[pl.ds(t * C, C), pl.ds(lo, L)] = vals
        # TODO(synk): cast operands to bf16 on v6e/v7x once tolerance allows.
        return jnp.dot(w_ref[...], patch_ref[...],
                       preferred_element_type=jnp.float32)       # (C, HW)

    def bn_apply(y, s_ref, q_ref, g_ref, b_ref):
        # training-mode BN from accumulated per-channel sum / sum-of-squares
        mean = s_ref[...] / count                                 # (C, 1)
        var = q_ref[...] / count - mean * mean                    # biased var
        return (y - mean) * lax.rsqrt(var + EPS) * g_ref[...] + b_ref[...]

    # One-time init: stats accumulators and the zero strips of the patch
    # scratch that lie outside every tap's valid window (never rewritten).
    @pl.when(jnp.logical_and(phase == 0, n == 0))
    def _init():
        s1_ref[...] = jnp.zeros_like(s1_ref)
        q1_ref[...] = jnp.zeros_like(q1_ref)
        s2_ref[...] = jnp.zeros_like(s2_ref)
        q2_ref[...] = jnp.zeros_like(q2_ref)
        patch_ref[...] = jnp.zeros_like(patch_ref)

    x_t = x_ref[0].astype(jnp.float32)        # (C, HW) lane-dense tile
    c1 = conv3x3(x_t, w1_ref)                 # conv1

    @pl.when(phase == 0)
    def _bn1_stats():
        s1_ref[...] += jnp.sum(c1, axis=-1, keepdims=True)
        q1_ref[...] += jnp.sum(c1 * c1, axis=-1, keepdims=True)

    @pl.when(phase > 0)
    def _bn1_apply_conv2():
        h = jnp.maximum(bn_apply(c1, s1_ref, q1_ref, g1_ref, be1_ref), 0.0)
        c2 = conv3x3(h, w2_ref)               # conv2

        @pl.when(phase == 1)
        def _bn2_stats():
            s2_ref[...] += jnp.sum(c2, axis=-1, keepdims=True)
            q2_ref[...] += jnp.sum(c2 * c2, axis=-1, keepdims=True)

        @pl.when(phase == 2)
        def _finalize():
            o = bn_apply(c2, s2_ref, q2_ref, g2_ref, be2_ref) + x_t
            out_ref[0] = jnp.maximum(o, 0.0).astype(out_ref.dtype)


def _conv_weight_2d(w):
    # torch (O, I, 3, 3) -> (O, 9*I); rows ordered as (tap = ky*3+kx, in-chan)
    o, i = w.shape[0], w.shape[1]
    return jnp.transpose(w, (0, 2, 3, 1)).reshape(o, 9 * i)


def _tap_masks(H, W):
    # mask[t, y*W+x] == 1 iff source pixel (y+ky-1, x+kx-1) is inside the image
    ys, xs = np.meshgrid(np.arange(H), np.arange(W), indexing="ij")
    masks = []
    for ky in range(3):
        for kx in range(3):
            oy, ox = ky - 1, kx - 1
            m = ((ys + oy >= 0) & (ys + oy < H) &
                 (xs + ox >= 0) & (xs + ox < W))
            masks.append(m.reshape(-1))
    return jnp.asarray(np.stack(masks), dtype=jnp.float32)        # (9, H*W)


def residual_block(x_nchw, params):
    """params: torch-layout weights w1/w2 (O,I,3,3), b*/g*/be* (C,)."""
    N, C, H, W = x_nchw.shape
    HW = H * W
    assert params["w1"].shape[0] == C and params["w2"].shape[0] == C, \
        "residual add requires in_channels == out_channels"

    x_flat = x_nchw.reshape(N, C, HW).astype(jnp.float32)  # free reshape (NCHW)
    w1_t = _conv_weight_2d(params["w1"]).astype(jnp.float32)
    w2_t = _conv_weight_2d(params["w2"]).astype(jnp.float32)
    g1 = params["g1"].reshape(C, 1).astype(jnp.float32)
    be1 = params["be1"].reshape(C, 1).astype(jnp.float32)
    g2 = params["g2"].reshape(C, 1).astype(jnp.float32)
    be2 = params["be2"].reshape(C, 1).astype(jnp.float32)
    masks = _tap_masks(H, W)
    # conv biases b1/b2 are NOT passed: exactly cancelled by training-mode BN.

    kernel = functools.partial(residual_block_kernel, H=H, W=W, n_batch=N)

    def full(shape):
        return pl.BlockSpec(shape, lambda p, n: (0,) * len(shape))

    out_flat = pl.pallas_call(
        kernel,
        out_shape=jax.ShapeDtypeStruct((N, C, HW), jnp.float32),
        grid=(3, N),                                  # (phase, batch tile)
        in_specs=[
            pl.BlockSpec((1, C, HW), lambda p, n: (n, 0, 0)),   # x tile
            full((9, HW)),                                      # tap masks
            full((C, 9 * C)),                                   # w1 (im2col)
            full((C, 1)), full((C, 1)),                         # gamma1, beta1
            full((C, 9 * C)),                                   # w2 (im2col)
            full((C, 1)), full((C, 1)),                         # gamma2, beta2
        ],
        out_specs=pl.BlockSpec((1, C, HW), lambda p, n: (n, 0, 0)),
        scratch_shapes=[
            pltpu.VMEM((C, 1), jnp.float32),        # sum(conv1)
            pltpu.VMEM((C, 1), jnp.float32),        # sum(conv1^2)
            pltpu.VMEM((C, 1), jnp.float32),        # sum(conv2)
            pltpu.VMEM((C, 1), jnp.float32),        # sum(conv2^2)
            pltpu.VMEM((9 * C, HW), jnp.float32),   # transposed im2col patches
        ],
        compiler_params=pltpu.CompilerParams(
            # phase axis is a reduction; batch axis shares the BN stat
            # accumulators -> both must stay sequential on one core.
            dimension_semantics=("arbitrary", "arbitrary"),
            vmem_limit_bytes=32 * 1024 * 1024,
        ),
    )(x_flat, masks, w1_t, g1, be1, w2_t, g2, be2)

    return out_flat.reshape(N, C, H, W)


# ---------------- pure-JAX reference (NCHW, same as the PyTorch module) -------
def ref_forward(x, p):
    def conv(h, w, b):
        y = lax.conv_general_dilated(h, w, (1, 1), "SAME",
                                     dimension_numbers=("NCHW", "OIHW", "NCHW"))
        return y + b[None, :, None, None]

    def bn(y, g, be):
        mean = y.mean(axis=(0, 2, 3), keepdims=True)
        var = ((y - mean) ** 2).mean(axis=(0, 2, 3), keepdims=True)
        return (y - mean) * lax.rsqrt(var + EPS) * g[None, :, None, None] \
            + be[None, :, None, None]

    h = jax.nn.relu(bn(conv(x, p["w1"], p["b1"]), p["g1"], p["be1"]))
    o = bn(conv(h, p["w2"], p["b2"]), p["g2"], p["be2"])
    return jax.nn.relu(o + x)


if __name__ == "__main__":
    # in_channels == out_channels == 4 (required for the residual add)
    N, C, H, W = 2, 4, 16, 16
    key = jax.random.PRNGKey(0)
    k = jax.random.split(key, 6)

    x = jax.random.normal(k[0], (N, C, H, W), jnp.float32)
    params = {
        "w1": 0.1 * jax.random.normal(k[1], (C, C, 3, 3), jnp.float32),
        "b1": 0.1 * jax.random.normal(k[2], (C,), jnp.float32),
        "g1": jnp.ones((C,), jnp.float32),      # BatchNorm defaults
        "be1": jnp.zeros((C,), jnp.float32),
        "w2": 0.1 * jax.random.normal(k[3], (C, C, 3, 3), jnp.float32),
        "b2": 0.1 * jax.random.normal(k[4], (C,), jnp.float32),
        "g2": jnp.ones((C,), jnp.float32),
        "be2": jnp.zeros((C,), jnp.float32),
    }

    out = jax.block_until_ready(residual_block(x, params))
    ref = jax.block_until_ready(ref_forward(x, params))

    assert out.shape == (N, C, H, W)
    err = float(jnp.max(jnp.abs(out - ref)))
    assert jnp.allclose(out, ref, atol=1e-3, rtol=1e-3), f"max err {err}"

    print("KERNEL_OK")
</pallas_src>

<mosaic_0001>
module attributes {stable_mosaic.version = 11 : i64} {
  func.func @residual_block_kernel(%arg0: i32, %arg1: i32, %arg2: memref<1x4x256xf32, #tpu.memory_space<vmem>>, %arg3: memref<9x256xf32, #tpu.memory_space<vmem>>, %arg4: memref<4x36xf32, #tpu.memory_space<vmem>>, %arg5: memref<4x1xf32, #tpu.memory_space<vmem>>, %arg6: memref<4x1xf32, #tpu.memory_space<vmem>>, %arg7: memref<4x36xf32, #tpu.memory_space<vmem>>, %arg8: memref<4x1xf32, #tpu.memory_space<vmem>>, %arg9: memref<4x1xf32, #tpu.memory_space<vmem>>, %arg10: memref<1x4x256xf32, #tpu.memory_space<vmem>>, %arg11: memref<4x1xf32, #tpu.memory_space<vmem>>, %arg12: memref<4x1xf32, #tpu.memory_space<vmem>>, %arg13: memref<4x1xf32, #tpu.memory_space<vmem>>, %arg14: memref<4x1xf32, #tpu.memory_space<vmem>>, %arg15: memref<36x256xf32, #tpu.memory_space<vmem>>) attributes {dimension_semantics = [#tpu.dimension_semantics<arbitrary>, #tpu.dimension_semantics<arbitrary>], iteration_bounds = array<i64: 3, 2>, scalar_prefetch = 0 : i64, scratch_operands = 5 : i64, tpu.core_type = #tpu.core_type<tc>, window_params = [{transform_indices = @transform_0, window_bounds = array<i64: 1, 4, 256>}, {pipeline_mode = #tpu.pipeline_mode<synchronous>, transform_indices = @transform_1, window_bounds = array<i64: 9, 256>}, {pipeline_mode = #tpu.pipeline_mode<synchronous>, transform_indices = @transform_2, window_bounds = array<i64: 4, 36>}, {pipeline_mode = #tpu.pipeline_mode<synchronous>, transform_indices = @transform_3, window_bounds = array<i64: 4, 1>}, {pipeline_mode = #tpu.pipeline_mode<synchronous>, transform_indices = @transform_4, window_bounds = array<i64: 4, 1>}, {pipeline_mode = #tpu.pipeline_mode<synchronous>, transform_indices = @transform_5, window_bounds = array<i64: 4, 36>}, {pipeline_mode = #tpu.pipeline_mode<synchronous>, transform_indices = @transform_6, window_bounds = array<i64: 4, 1>}, {pipeline_mode = #tpu.pipeline_mode<synchronous>, transform_indices = @transform_7, window_bounds = array<i64: 4, 1>}, {transform_indices = @transform_8, window_bounds = array<i64: 1, 4, 256>}]} {
    %c0_i32 = arith.constant 0 : i32
    %0 = arith.cmpi eq, %arg0, %c0_i32 : i32
    %c0_i32_0 = arith.constant 0 : i32
    %1 = arith.cmpi eq, %arg1, %c0_i32_0 : i32
    %2 = arith.andi %0, %1 : i1
    %3 = arith.extui %2 : i1 to i32
    %c0_i32_1 = arith.constant 0 : i32
    %4 = arith.cmpi ne, %3, %c0_i32_1 : i32
    scf.if %4 {
      %cst_32 = arith.constant 0.000000e+00 : f32
      %60 = vector.broadcast %cst_32 : f32 to vector<4x1xf32>
      %c0_33 = arith.constant 0 : index
      %c0_34 = arith.constant 0 : index
      %61 = vector.load %arg11[%c0_33, %c0_34] : memref<4x1xf32, #tpu.memory_space<vmem>>, vector<4x1xf32>
      tpu.vector_store %arg11[%c0_33, %c0_34], %60 {strides = array<i32>} : memref<4x1xf32, #tpu.memory_space<vmem>>, vector<4x1xf32>,
      %cst_35 = arith.constant 0.000000e+00 : f32
      %62 = vector.broadcast %cst_35 : f32 to vector<4x1xf32>
      %c0_36 = arith.constant 0 : index
      %c0_37 = arith.constant 0 : index
      %63 = vector.load %arg12[%c0_36, %c0_37] : memref<4x1xf32, #tpu.memory_space<vmem>>, vector<4x1xf32>
      tpu.vector_store %arg12[%c0_36, %c0_37], %62 {strides = array<i32>} : memref<4x1xf32, #tpu.memory_space<vmem>>, vector<4x1xf32>,
      %cst_38 = arith.constant 0.000000e+00 : f32
      %64 = vector.broadcast %cst_38 : f32 to vector<4x1xf32>
      %c0_39 = arith.constant 0 : index
      %c0_40 = arith.constant 0 : index
      %65 = vector.load %arg13[%c0_39, %c0_40] : memref<4x1xf32, #tpu.memory_space<vmem>>, vector<4x1xf32>
      tpu.vector_store %arg13[%c0_39, %c0_40], %64 {strides = array<i32>} : memref<4x1xf32, #tpu.memory_space<vmem>>, vector<4x1xf32>,
      %cst_41 = arith.constant 0.000000e+00 : f32
      %66 = vector.broadcast %cst_41 : f32 to vector<4x1xf32>
      %c0_42 = arith.constant 0 : index
      %c0_43 = arith.constant 0 : index
      %67 = vector.load %arg14[%c0_42, %c0_43] : memref<4x1xf32, #tpu.memory_space<vmem>>, vector<4x1xf32>
      tpu.vector_store %arg14[%c0_42, %c0_43], %66 {strides = array<i32>} : memref<4x1xf32, #tpu.memory_space<vmem>>, vector<4x1xf32>,
      %cst_44 = arith.constant 0.000000e+00 : f32
      %68 = vector.broadcast %cst_44 : f32 to vector<36x256xf32>
      %c0_45 = arith.constant 0 : index
      %c0_46 = arith.constant 0 : index
      %69 = vector.load %arg15[%c0_45, %c0_46] : memref<36x256xf32, #tpu.memory_space<vmem>>, vector<36x256xf32>
      tpu.vector_store %arg15[%c0_45, %c0_46], %68 {strides = array<i32>} : memref<36x256xf32, #tpu.memory_space<vmem>>, vector<36x256xf32>,
    } else {
    }
    %c0 = arith.constant 0 : index
    %c0_2 = arith.constant 0 : index
    %c0_3 = arith.constant 0 : index
    %5 = vector.load %arg2[%c0, %c0_2, %c0_3] : memref<1x4x256xf32, #tpu.memory_space<vmem>>, vector<1x4x256xf32>
    %6 = vector.shape_cast %5 : vector<1x4x256xf32> to vector<4x256xf32>
    %7 = vector.extract_strided_slice %6 {offsets = [0, 0], sizes = [4, 239], strides = [1, 1]} : vector<4x256xf32> to vector<4x239xf32>
    %c0_4 = arith.constant 0 : index
    %c17 = arith.constant 17 : index
    %8 = vector.load %arg3[%c0_4, %c17] : memref<9x256xf32, #tpu.memory_space<vmem>>, vector<1x239xf32>
    %9 = vector.broadcast %8 : vector<1x239xf32> to vector<4x239xf32>
    %10 = arith.mulf %7, %9 : vector<4x239xf32>
    %c0_5 = arith.constant 0 : index
    %c17_6 = arith.constant 17 : index
    %11 = vector.load %arg15[%c0_5, %c17_6] : memref<36x256xf32, #tpu.memory_space<vmem>>, vector<4x239xf32>
    tpu.vector_store %arg15[%c0_5, %c17_6], %10 {strides = array<i32>} : memref<36x256xf32, #tpu.memory_space<vmem>>, vector<4x239xf32>,
    %12 = vector.extract_strided_slice %6 {offsets = [0, 0], sizes = [4, 240], strides = [1, 1]} : vector<4x256xf32> to vector<4x240xf32>
    %c1 = arith.constant 1 : index
    %c16 = arith.constant 16 : index
    %13 = vector.load %arg3[%c1, %c16] : memref<9x256xf32, #tpu.memory_space<vmem>>, vector<1x240xf32>
    %14 = vector.broadcast %13 : vector<1x240xf32> to vector<4x240xf32>
    %15 = arith.mulf %12, %14 : vector<4x240xf32>
    %c4 = arith.constant 4 : index
    %c16_7 = arith.constant 16 : index
    %16 = vector.load %arg15[%c4, %c16_7] : memref<36x256xf32, #tpu.memory_space<vmem>>, vector<4x240xf32>
    tpu.vector_store %arg15[%c4, %c16_7], %15 {strides = array<i32>} : memref<36x256xf32, #tpu.memory_space<vmem>>, vector<4x240xf32>,
    %17 = vector.extract_strided_slice %6 {offsets = [0, 0], sizes = [4, 241], strides = [1, 1]} : vector<4x256xf32> to vector<4x241xf32>
    %c2 = arith.constant 2 : index
    %c15 = arith.constant 15 : index
    %18 = vector.load %arg3[%c2, %c15] : memref<9x256xf32, #tpu.memory_space<vmem>>, vector<1x241xf32>
    %19 = vector.broadcast %18 : vector<1x241xf32> to vector<4x241xf32>
    %20 = arith.mulf %17, %19 : vector<4x241xf32>
    %c8 = arith.constant 8 : index
    %c15_8 = arith.constant 15 : index
    %21 = vector.load %arg15[%c8, %c15_8] : memref<36x256xf32, #tpu.memory_space<vmem>>, vector<4x241xf32>
    tpu.vector_store %arg15[%c8, %c15_8], %20 {strides = array<i32>} : memref<36x256xf32, #tpu.memory_space<vmem>>, vector<4x241xf32>,
    %22 = vector.extract_strided_slice %6 {offsets = [0, 0], sizes = [4, 255], strides = [1, 1]} : vector<4x256xf32> to vector<4x255xf32>
    %c3 = arith.constant 3 : index
    %c1_9 = arith.constant 1 : index
    %23 = vector.load %arg3[%c3, %c1_9] : memref<9x256xf32, #tpu.memory_space<vmem>>, vector<1x255xf32>
    %24 = vector.broadcast %23 : vector<1x255xf32> to vector<4x255xf32>
    %25 = arith.mulf %22, %24 : vector<4x255xf32>
    %c12 = arith.constant 12 : index
    %c1_10 = arith.constant 1 : index
    %26 = vector.load %arg15[%c12, %c1_10] : memref<36x256xf32, #tpu.memory_space<vmem>>, vector<4x255xf32>
    tpu.vector_store %arg15[%c12, %c1_10], %25 {strides = array<i32>} : memref<36x256xf32, #tpu.memory_space<vmem>>, vector<4x255xf32>,
    %c4_11 = arith.constant 4 : index
    %c0_12 = arith.constant 0 : index
    %27 = vector.load %arg3[%c4_11, %c0_12] : memref<9x256xf32, #tpu.memory_space<vmem>>, vector<1x256xf32>
    %28 = vector.broadcast %27 : vector<1x256xf32> to vector<4x256xf32>
    %29 = arith.mulf %6, %28 : vector<4x256xf32>
    %c16_13 = arith.constant 16 : index
    %c0_14 = arith.constant 0 : index
    %30 = vector.load %arg15[%c16_13, %c0_14] : memref<36x256xf32, #tpu.memory_space<vmem>>, vector<4x256xf32>
    tpu.vector_store %arg15[%c16_13, %c0_14], %29 {strides = array<i32>} : memref<36x256xf32, #tpu.memory_space<vmem>>, vector<4x256xf32>,
    %31 = vector.extract_strided_slice %6 {offsets = [0, 1], sizes = [4, 255], strides = [1, 1]} : vector<4x256xf32> to vector<4x255xf32>
    %c5 = arith.constant 5 : index
    %c0_15 = arith.constant 0 : index
    %32 = vector.load %arg3[%c5, %c0_15] : memref<9x256xf32, #tpu.memory_space<vmem>>, vector<1x255xf32>
    %33 = vector.broadcast %32 : vector<1x255xf32> to vector<4x255xf32>
    %34 = arith.mulf %31, %33 : vector<4x255xf32>
    %c20 = arith.constant 20 : index
    %c0_16 = arith.constant 0 : index
    %35 = vector.load %arg15[%c20, %c0_16] : memref<36x256xf32, #tpu.memory_space<vmem>>, vector<4x255xf32>
    tpu.vector_store %arg15[%c20, %c0_16], %34 {strides = array<i32>} : memref<36x256xf32, #tpu.memory_space<vmem>>, vector<4x255xf32>,
    %36 = vector.extract_strided_slice %6 {offsets = [0, 15], sizes = [4, 241], strides = [1, 1]} : vector<4x256xf32> to vector<4x241xf32>
    %c6 = arith.constant 6 : index
    %c0_17 = arith.constant 0 : index
    %37 = vector.load %arg3[%c6, %c0_17] : memref<9x256xf32, #tpu.memory_space<vmem>>, vector<1x241xf32>
    %38 = vector.broadcast %37 : vector<1x241xf32> to vector<4x241xf32>
    %39 = arith.mulf %36, %38 : vector<4x241xf32>
    %c24 = arith.constant 24 : index
    %c0_18 = arith.constant 0 : index
    %40 = vector.load %arg15[%c24, %c0_18] : memref<36x256xf32, #tpu.memory_space<vmem>>, vector<4x241xf32>
    tpu.vector_store %arg15[%c24, %c0_18], %39 {strides = array<i32>} : memref<36x256xf32, #tpu.memory_space<vmem>>, vector<4x241xf32>,
    %41 = vector.extract_strided_slice %6 {offsets = [0, 16], sizes = [4, 240], strides = [1, 1]} : vector<4x256xf32> to vector<4x240xf32>
    %c7 = arith.constant 7 : index
    %c0_19 = arith.constant 0 : index
    %42 = vector.load %arg3[%c7, %c0_19] : memref<9x256xf32, #tpu.memory_space<vmem>>, vector<1x240xf32>
    %43 = vector.broadcast %42 : vector<1x240xf32> to vector<4x240xf32>
    %44 = arith.mulf %41, %43 : vector<4x240xf32>
    %c28 = arith.constant 28 : index
    %c0_20 = arith.constant 0 : index
    %45 = vector.load %arg15[%c28, %c0_20] : memref<36x256xf32, #tpu.memory_space<vmem>>, vector<4x240xf32>
    tpu.vector_store %arg15[%c28, %c0_20], %44 {strides = array<i32>} : memref<36x256xf32, #tpu.memory_space<vmem>>, vector<4x240xf32>,
    %46 = vector.extract_strided_slice %6 {offsets = [0, 17], sizes = [4, 239], strides = [1, 1]} : vector<4x256xf32> to vector<4x239xf32>
    %c8_21 = arith.constant 8 : index
    %c0_22 = arith.constant 0 : index
    %47 = vector.load %arg3[%c8_21, %c0_22] : memref<9x256xf32, #tpu.memory_space<vmem>>, vector<1x239xf32>
    %48 = vector.broadcast %47 : vector<1x239xf32> to vector<4x239xf32>
    %49 = arith.mulf %46, %48 : vector<4x239xf32>
    %c32 = arith.constant 32 : index
    %c0_23 = arith.constant 0 : index
    %50 = vector.load %arg15[%c32, %c0_23] : memref<36x256xf32, #tpu.memory_space<vmem>>, vector<4x239xf32>
    tpu.vector_store %arg15[%c32, %c0_23], %49 {strides = array<i32>} : memref<36x256xf32, #tpu.memory_space<vmem>>, vector<4x239xf32>,
    %c0_24 = arith.constant 0 : index
    %c0_25 = arith.constant 0 : index
    %51 = vector.load %arg4[%c0_24, %c0_25] : memref<4x36xf32, #tpu.memory_space<vmem>>, vector<4x36xf32>
    %c0_26 = arith.constant 0 : index
    %c0_27 = arith.constant 0 : index
    %52 = vector.load %arg15[%c0_26, %c0_27] : memref<36x256xf32, #tpu.memory_space<vmem>>, vector<36x256xf32>
    %cst = arith.constant dense<0.000000e+00> : vector<4x256xf32>
    %53 = tpu.matmul %51, %52, %cst {dimension_numbers = #tpu.dot_dimension_numbers<[1], [0], [0], [1], [0, 0, 1, 1], [], []>} : vector<4x36xf32>, vector<36x256xf32>, vector<4x256xf32> -> vector<4x256xf32>
    %c0_i32_28 = arith.constant 0 : i32
    %54 = arith.cmpi eq, %arg0, %c0_i32_28 : i32
    %55 = arith.extui %54 : i1 to i32
    %c0_i32_29 = arith.constant 0 : i32
    %56 = arith.cmpi ne, %55, %c0_i32_29 : i32
    scf.if %56 {
      %c0_32 = arith.constant 0 : index
      %c0_33 = arith.constant 0 : index
      %60 = vector.load %arg11[%c0_32, %c0_33] : memref<4x1xf32, #tpu.memory_space<vmem>>, vector<4x1xf32>
      %cst_34 = arith.constant dense<0.000000e+00> : vector<4xf32>
      %61 = vector.multi_reduction <add>, %53, %cst_34 [1] : vector<4x256xf32> to vector<4xf32>
      %62 = vector.shape_cast %61 : vector<4xf32> to vector<4x1xf32>
      %63 = arith.addf %60, %62 : vector<4x1xf32>
      %c0_35 = arith.constant 0 : index
      %c0_36 = arith.constant 0 : index
      %64 = vector.load %arg11[%c0_35, %c0_36] : memref<4x1xf32, #tpu.memory_space<vmem>>, vector<4x1xf32>
      tpu.vector_store %arg11[%c0_35, %c0_36], %63 {strides = array<i32>} : memref<4x1xf32, #tpu.memory_space<vmem>>, vector<4x1xf32>,
      %c0_37 = arith.constant 0 : index
      %c0_38 = arith.constant 0 : index
      %65 = vector.load %arg12[%c0_37, %c0_38] : memref<4x1xf32, #tpu.memory_space<vmem>>, vector<4x1xf32>
      %66 = arith.mulf %53, %53 : vector<4x256xf32>
      %cst_39 = arith.constant dense<0.000000e+00> : vector<4xf32>
      %67 = vector.multi_reduction <add>, %66, %cst_39 [1] : vector<4x256xf32> to vector<4xf32>
      %68 = vector.shape_cast %67 : vector<4xf32> to vector<4x1xf32>
      %69 = arith.addf %65, %68 : vector<4x1xf32>
      %c0_40 = arith.constant 0 : index
      %c0_41 = arith.constant 0 : index
      %70 = vector.load %arg12[%c0_40, %c0_41] : memref<4x1xf32, #tpu.memory_space<vmem>>, vector<4x1xf32>
      tpu.vector_store %arg12[%c0_40, %c0_41], %69 {strides = array<i32>} : memref<4x1xf32, #tpu.memory_space<vmem>>, vector<4x1xf32>,
    } else {
    }
    %c0_i32_30 = arith.constant 0 : i32
    %57 = arith.cmpi sgt, %arg0, %c0_i32_30 : i32
    %58 = arith.extui %57 : i1 to i32
    %c0_i32_31 = arith.constant 0 : i32
    %59 = arith.cmpi ne, %58, %c0_i32_31 : i32
    scf.if %59 {
      %c0_32 = arith.constant 0 : index
      %c0_33 = arith.constant 0 : index
      %60 = vector.load %arg11[%c0_32, %c0_33] : memref<4x1xf32, #tpu.memory_space<vmem>>, vector<4x1xf32>
      %cst_34 = arith.constant 5.120000e+02 : f32
      %61 = vector.broadcast %cst_34 : f32 to vector<4x1xf32>
      %62 = arith.divf %60, %61 : vector<4x1xf32>
      %c0_35 = arith.constant 0 : index
      %c0_36 = arith.constant 0 : index
      %63 = vector.load %arg12[%c0_35, %c0_36] : memref<4x1xf32, #tpu.memory_space<vmem>>, vector<4x1xf32>
      %cst_37 = arith.constant 5.120000e+02 : f32
      %64 = vector.broadcast %cst_37 : f32 to vector<4x1xf32>
      %65 = arith.divf %63, %64 : vector<4x1xf32>
      %66 = arith.mulf %62, %62 : vector<4x1xf32>
      %67 = arith.subf %65, %66 : vector<4x1xf32>
      %68 = vector.broadcast %62 : vector<4x1xf32> to vector<4x256xf32>
      %69 = arith.subf %53, %68 : vector<4x256xf32>
      %cst_38 = arith.constant 9.99999974E-6 : f32
      %70 = vector.broadcast %cst_38 : f32 to vector<4x1xf32>
      %71 = arith.addf %67, %70 : vector<4x1xf32>
      %72 = math.rsqrt %71 : vector<4x1xf32>
      %73 = vector.broadcast %72 : vector<4x1xf32> to vector<4x256xf32>
      %74 = arith.mulf %69, %73 : vector<4x256xf32>
      %c0_39 = arith.constant 0 : index
      %c0_40 = arith.constant 0 : index
      %75 = vector.load %arg5[%c0_39, %c0_40] : memref<4x1xf32, #tpu.memory_space<vmem>>, vector<4x1xf32>
      %76 = vector.broadcast %75 : vector<4x1xf32> to vector<4x256xf32>
      %77 = arith.mulf %74, %76 : vector<4x256xf32>
      %c0_41 = arith.constant 0 : index
      %c0_42 = arith.constant 0 : index
      %78 = vector.load %arg6[%c0_41, %c0_42] : memref<4x1xf32, #tpu.memory_space<vmem>>, vector<4x1xf32>
      %79 = vector.broadcast %78 : vector<4x1xf32> to vector<4x256xf32>
      %80 = arith.addf %77, %79 : vector<4x256xf32>
      %cst_43 = arith.constant 0.000000e+00 : f32
      %81 = vector.broadcast %cst_43 : f32 to vector<4x256xf32>
      %82 = arith.maximumf %80, %81 : vector<4x256xf32>
      %83 = vector.extract_strided_slice %82 {offsets = [0, 0], sizes = [4, 239], strides = [1, 1]} : vector<4x256xf32> to vector<4x239xf32>
      %c0_44 = arith.constant 0 : index
      %c17_45 = arith.constant 17 : index
      %84 = vector.load %arg3[%c0_44, %c17_45] : memref<9x256xf32, #tpu.memory_space<vmem>>, vector<1x239xf32>
      %85 = vector.broadcast %84 : vector<1x239xf32> to vector<4x239xf32>
      %86 = arith.mulf %83, %85 : vector<4x239xf32>
      %c0_46 = arith.constant 0 : index
      %c17_47 = arith.constant 17 : index
      %87 = vector.load %arg15[%c0_46, %c17_47] : memref<36x256xf32, #tpu.memory_space<vmem>>, vector<4x239xf32>
      tpu.vector_store %arg15[%c0_46, %c17_47], %86 {strides = array<i32>} : memref<36x256xf32, #tpu.memory_space<vmem>>, vector<4x239xf32>,
      %88 = vector.extract_strided_slice %82 {offsets = [0, 0], sizes = [4, 240], strides = [1, 1]} : vector<4x256xf32> to vector<4x240xf32>
      %c1_48 = arith.constant 1 : index
      %c16_49 = arith.constant 16 : index
      %89 = vector.load %arg3[%c1_48, %c16_49] : memref<9x256xf32, #tpu.memory_space<vmem>>, vector<1x240xf32>
      %90 = vector.broadcast %89 : vector<1x240xf32> to vector<4x240xf32>
      %91 = arith.mulf %88, %90 : vector<4x240xf32>
      %c4_50 = arith.constant 4 : index
      %c16_51 = arith.constant 16 : index
      %92 = vector.load %arg15[%c4_50, %c16_51] : memref<36x256xf32, #tpu.memory_space<vmem>>, vector<4x240xf32>
      tpu.vector_store %arg15[%c4_50, %c16_51], %91 {strides = array<i32>} : memref<36x256xf32, #tpu.memory_space<vmem>>, vector<4x240xf32>,
      %93 = vector.extract_strided_slice %82 {offsets = [0, 0], sizes = [4, 241], strides = [1, 1]} : vector<4x256xf32> to vector<4x241xf32>
      %c2_52 = arith.constant 2 : index
      %c15_53 = arith.constant 15 : index
      %94 = vector.load %arg3[%c2_52, %c15_53] : memref<9x256xf32, #tpu.memory_space<vmem>>, vector<1x241xf32>
      %95 = vector.broadcast %94 : vector<1x241xf32> to vector<4x241xf32>
      %96 = arith.mulf %93, %95 : vector<4x241xf32>
      %c8_54 = arith.constant 8 : index
      %c15_55 = arith.constant 15 : index
      %97 = vector.load %arg15[%c8_54, %c15_55] : memref<36x256xf32, #tpu.memory_space<vmem>>, vector<4x241xf32>
      tpu.vector_store %arg15[%c8_54, %c15_55], %96 {strides = array<i32>} : memref<36x256xf32, #tpu.memory_space<vmem>>, vector<4x241xf32>,
      %98 = vector.extract_strided_slice %82 {offsets = [0, 0], sizes = [4, 255], strides = [1, 1]} : vector<4x256xf32> to vector<4x255xf32>
      %c3_56 = arith.constant 3 : index
      %c1_57 = arith.constant 1 : index
      %99 = vector.load %arg3[%c3_56, %c1_57] : memref<9x256xf32, #tpu.memory_space<vmem>>, vector<1x255xf32>
      %100 = vector.broadcast %99 : vector<1x255xf32> to vector<4x255xf32>
      %101 = arith.mulf %98, %100 : vector<4x255xf32>
      %c12_58 = arith.constant 12 : index
      %c1_59 = arith.constant 1 : index
      %102 = vector.load %arg15[%c12_58, %c1_59] : memref<36x256xf32, #tpu.memory_space<vmem>>, vector<4x255xf32>
      tpu.vector_store %arg15[%c12_58, %c1_59], %101 {strides = array<i32>} : memref<36x256xf32, #tpu.memory_space<vmem>>, vector<4x255xf32>,
      %c4_60 = arith.constant 4 : index
      %c0_61 = arith.constant 0 : index
      %103 = vector.load %arg3[%c4_60, %c0_61] : memref<9x256xf32, #tpu.memory_space<vmem>>, vector<1x256xf32>
      %104 = vector.broadcast %103 : vector<1x256xf32> to vector<4x256xf32>
      %105 = arith.mulf %82, %104 : vector<4x256xf32>
      %c16_62 = arith.constant 16 : index
      %c0_63 = arith.constant 0 : index
      %106 = vector.load %arg15[%c16_62, %c0_63] : memref<36x256xf32, #tpu.memory_space<vmem>>, vector<4x256xf32>
      tpu.vector_store %arg15[%c16_62, %c0_63], %105 {strides = array<i32>} : memref<36x256xf32, #tpu.memory_space<vmem>>, vector<4x256xf32>,
      %107 = vector.extract_strided_slice %82 {offsets = [0, 1], sizes = [4, 255], strides = [1, 1]} : vector<4x256xf32> to vector<4x255xf32>
      %c5_64 = arith.constant 5 : index
      %c0_65 = arith.constant 0 : index
      %108 = vector.load %arg3[%c5_64, %c0_65] : memref<9x256xf32, #tpu.memory_space<vmem>>, vector<1x255xf32>
      %109 = vector.broadcast %108 : vector<1x255xf32> to vector<4x255xf32>
      %110 = arith.mulf %107, %109 : vector<4x255xf32>
      %c20_66 = arith.constant 20 : index
      %c0_67 = arith.constant 0 : index
      %111 = vector.load %arg15[%c20_66, %c0_67] : memref<36x256xf32, #tpu.memory_space<vmem>>, vector<4x255xf32>
      tpu.vector_store %arg15[%c20_66, %c0_67], %110 {strides = array<i32>} : memref<36x256xf32, #tpu.memory_space<vmem>>, vector<4x255xf32>,
      %112 = vector.extract_strided_slice %82 {offsets = [0, 15], sizes = [4, 241], strides = [1, 1]} : vector<4x256xf32> to vector<4x241xf32>
      %c6_68 = arith.constant 6 : index
      %c0_69 = arith.constant 0 : index
      %113 = vector.load %arg3[%c6_68, %c0_69] : memref<9x256xf32, #tpu.memory_space<vmem>>, vector<1x241xf32>
      %114 = vector.broadcast %113 : vector<1x241xf32> to vector<4x241xf32>
      %115 = arith.mulf %112, %114 : vector<4x241xf32>
      %c24_70 = arith.constant 24 : index
      %c0_71 = arith.constant 0 : index
      %116 = vector.load %arg15[%c24_70, %c0_71] : memref<36x256xf32, #tpu.memory_space<vmem>>, vector<4x241xf32>
      tpu.vector_store %arg15[%c24_70, %c0_71], %115 {strides = array<i32>} : memref<36x256xf32, #tpu.memory_space<vmem>>, vector<4x241xf32>,
      %117 = vector.extract_strided_slice %82 {offsets = [0, 16], sizes = [4, 240], strides = [1, 1]} : vector<4x256xf32> to vector<4x240xf32>
      %c7_72 = arith.constant 7 : index
      %c0_73 = arith.constant 0 : index
      %118 = vector.load %arg3[%c7_72, %c0_73] : memref<9x256xf32, #tpu.memory_space<vmem>>, vector<1x240xf32>
      %119 = vector.broadcast %118 : vector<1x240xf32> to vector<4x240xf32>
      %120 = arith.mulf %117, %119 : vector<4x240xf32>
      %c28_74 = arith.constant 28 : index
      %c0_75 = arith.constant 0 : index
      %121 = vector.load %arg15[%c28_74, %c0_75] : memref<36x256xf32, #tpu.memory_space<vmem>>, vector<4x240xf32>
      tpu.vector_store %arg15[%c28_74, %c0_75], %120 {strides = array<i32>} : memref<36x256xf32, #tpu.memory_space<vmem>>, vector<4x240xf32>,
      %122 = vector.extract_strided_slice %82 {offsets = [0, 17], sizes = [4, 239], strides = [1, 1]} : vector<4x256xf32> to vector<4x239xf32>
      %c8_76 = arith.constant 8 : index
      %c0_77 = arith.constant 0 : index
      %123 = vector.load %arg3[%c8_76, %c0_77] : memref<9x256xf32, #tpu.memory_space<vmem>>, vector<1x239xf32>
      %124 = vector.broadcast %123 : vector<1x239xf32> to vector<4x239xf32>
      %125 = arith.mulf %122, %124 : vector<4x239xf32>
      %c32_78 = arith.constant 32 : index
      %c0_79 = arith.constant 0 : index
      %126 = vector.load %arg15[%c32_78, %c0_79] : memref<36x256xf32, #tpu.memory_space<vmem>>, vector<4x239xf32>
      tpu.vector_store %arg15[%c32_78, %c0_79], %125 {strides = array<i32>} : memref<36x256xf32, #tpu.memory_space<vmem>>, vector<4x239xf32>,
      %c0_80 = arith.constant 0 : index
      %c0_81 = arith.constant 0 : index
      %127 = vector.load %arg7[%c0_80, %c0_81] : memref<4x36xf32, #tpu.memory_space<vmem>>, vector<4x36xf32>
      %c0_82 = arith.constant 0 : index
      %c0_83 = arith.constant 0 : index
      %128 = vector.load %arg15[%c0_82, %c0_83] : memref<36x256xf32, #tpu.memory_space<vmem>>, vector<36x256xf32>
      %cst_84 = arith.constant dense<0.000000e+00> : vector<4x256xf32>
      %129 = tpu.matmul %127, %128, %cst_84 {dimension_numbers = #tpu.dot_dimension_numbers<[1], [0], [0], [1], [0, 0, 1, 1], [], []>} : vector<4x36xf32>, vector<36x256xf32>, vector<4x256xf32> -> vector<4x256xf32>
      %c1_i32 = arith.constant 1 : i32
      %130 = arith.cmpi eq, %arg0, %c1_i32 : i32
      %131 = arith.extui %130 : i1 to i32
      %c0_i32_85 = arith.constant 0 : i32
      %132 = arith.cmpi ne, %131, %c0_i32_85 : i32
      scf.if %132 {
        %c0_87 = arith.constant 0 : index
        %c0_88 = arith.constant 0 : index
        %136 = vector.load %arg13[%c0_87, %c0_88] : memref<4x1xf32, #tpu.memory_space<vmem>>, vector<4x1xf32>
        %cst_89 = arith.constant dense<0.000000e+00> : vector<4xf32>
        %137 = vector.multi_reduction <add>, %129, %cst_89 [1] : vector<4x256xf32> to vector<4xf32>
        %138 = vector.shape_cast %137 : vector<4xf32> to vector<4x1xf32>
        %139 = arith.addf %136, %138 : vector<4x1xf32>
        %c0_90 = arith.constant 0 : index
        %c0_91 = arith.constant 0 : index
        %140 = vector.load %arg13[%c0_90, %c0_91] : memref<4x1xf32, #tpu.memory_space<vmem>>, vector<4x1xf32>
        tpu.vector_store %arg13[%c0_90, %c0_91], %139 {strides = array<i32>} : memref<4x1xf32, #tpu.memory_space<vmem>>, vector<4x1xf32>,
        %c0_92 = arith.constant 0 : index
        %c0_93 = arith.constant 0 : index
        %141 = vector.load %arg14[%c0_92, %c0_93] : memref<4x1xf32, #tpu.memory_space<vmem>>, vector<4x1xf32>
        %142 = arith.mulf %129, %129 : vector<4x256xf32>
        %cst_94 = arith.constant dense<0.000000e+00> : vector<4xf32>
        %143 = vector.multi_reduction <add>, %142, %cst_94 [1] : vector<4x256xf32> to vector<4xf32>
        %144 = vector.shape_cast %143 : vector<4xf32> to vector<4x1xf32>
        %145 = arith.addf %141, %144 : vector<4x1xf32>
        %c0_95 = arith.constant 0 : index
        %c0_96 = arith.constant 0 : index
        %146 = vector.load %arg14[%c0_95, %c0_96] : memref<4x1xf32, #tpu.memory_space<vmem>>, vector<4x1xf32>
        tpu.vector_store %arg14[%c0_95, %c0_96], %145 {strides = array<i32>} : memref<4x1xf32, #tpu.memory_space<vmem>>, vector<4x1xf32>,
      } else {
      }
      %c2_i32 = arith.constant 2 : i32
      %133 = arith.cmpi eq, %arg0, %c2_i32 : i32
      %134 = arith.extui %133 : i1 to i32
      %c0_i32_86 = arith.constant 0 : i32
      %135 = arith.cmpi ne, %134, %c0_i32_86 : i32
      scf.if %135 {
        %c0_87 = arith.constant 0 : index
        %c0_88 = arith.constant 0 : index
        %136 = vector.load %arg13[%c0_87, %c0_88] : memref<4x1xf32, #tpu.memory_space<vmem>>, vector<4x1xf32>
        %cst_89 = arith.constant 5.120000e+02 : f32
        %137 = vector.broadcast %cst_89 : f32 to vector<4x1xf32>
        %138 = arith.divf %136, %137 : vector<4x1xf32>
        %c0_90 = arith.constant 0 : index
        %c0_91 = arith.constant 0 : index
        %139 = vector.load %arg14[%c0_90, %c0_91] : memref<4x1xf32, #tpu.memory_space<vmem>>, vector<4x1xf32>
        %cst_92 = arith.constant 5.120000e+02 : f32
        %140 = vector.broadcast %cst_92 : f32 to vector<4x1xf32>
        %141 = arith.divf %139, %140 : vector<4x1xf32>
        %142 = arith.mulf %138, %138 : vector<4x1xf32>
        %143 = arith.subf %141, %142 : vector<4x1xf32>
        %144 = vector.broadcast %138 : vector<4x1xf32> to vector<4x256xf32>
        %145 = arith.subf %129, %144 : vector<4x256xf32>
        %cst_93 = arith.constant 9.99999974E-6 : f32
        %146 = vector.broadcast %cst_93 : f32 to vector<4x1xf32>
        %147 = arith.addf %143, %146 : vector<4x1xf32>
        %148 = math.rsqrt %147 : vector<4x1xf32>
        %149 = vector.broadcast %148 : vector<4x1xf32> to vector<4x256xf32>
        %150 = arith.mulf %145, %149 : vector<4x256xf32>
        %c0_94 = arith.constant 0 : index
        %c0_95 = arith.constant 0 : index
        %151 = vector.load %arg8[%c0_94, %c0_95] : memref<4x1xf32, #tpu.memory_space<vmem>>, vector<4x1xf32>
        %152 = vector.broadcast %151 : vector<4x1xf32> to vector<4x256xf32>
        %153 = arith.mulf %150, %152 : vector<4x256xf32>
        %c0_96 = arith.constant 0 : index
        %c0_97 = arith.constant 0 : index
        %154 = vector.load %arg9[%c0_96, %c0_97] : memref<4x1xf32, #tpu.memory_space<vmem>>, vector<4x1xf32>
        %155 = vector.broadcast %154 : vector<4x1xf32> to vector<4x256xf32>
        %156 = arith.addf %153, %155 : vector<4x256xf32>
        %157 = arith.addf %156, %6 : vector<4x256xf32>
        %cst_98 = arith.constant 0.000000e+00 : f32
        %158 = vector.broadcast %cst_98 : f32 to vector<4x256xf32>
        %159 = arith.maximumf %157, %158 : vector<4x256xf32>
        %c0_99 = arith.constant 0 : index
        %c0_100 = arith.constant 0 : index
        %c0_101 = arith.constant 0 : index
        %160 = vector.load %arg10[%c0_99, %c0_100, %c0_101] : memref<1x4x256xf32, #tpu.memory_space<vmem>>, vector<1x4x256xf32>
        %161 = vector.shape_cast %160 : vector<1x4x256xf32> to vector<4x256xf32>
        %162 = vector.shape_cast %159 : vector<4x256xf32> to vector<1x4x256xf32>
        tpu.vector_store %arg10[%c0_99, %c0_100, %c0_101], %162 {strides = array<i32>} : memref<1x4x256xf32, #tpu.memory_space<vmem>>, vector<1x4x256xf32>,
      } else {
      }
    } else {
    }
    return
  }
  func.func @transform_0(%arg0: i32, %arg1: i32) -> (i32, i32, i32) {
    %c0_i32 = arith.constant 0 : i32
    %c0_i32_0 = arith.constant 0 : i32
    %c0_i32_1 = arith.constant 0 : i32
    return %arg1, %c0_i32, %c0_i32_0 : i32, i32, i32
  }
  func.func @transform_1(%arg0: i32, %arg1: i32) -> (i32, i32) {
    %c0_i32 = arith.constant 0 : i32
    %c0_i32_0 = arith.constant 0 : i32
    %c0_i32_1 = arith.constant 0 : i32
    return %c0_i32, %c0_i32_0 : i32, i32
  }
  func.func @transform_2(%arg0: i32, %arg1: i32) -> (i32, i32) {
    %c0_i32 = arith.constant 0 : i32
    %c0_i32_0 = arith.constant 0 : i32
    %c0_i32_1 = arith.constant 0 : i32
    return %c0_i32, %c0_i32_0 : i32, i32
  }
  func.func @transform_3(%arg0: i32, %arg1: i32) -> (i32, i32) {
    %c0_i32 = arith.constant 0 : i32
    %c0_i32_0 = arith.constant 0 : i32
    %c0_i32_1 = arith.constant 0 : i32
    return %c0_i32, %c0_i32_0 : i32, i32
  }
  func.func @transform_4(%arg0: i32, %arg1: i32) -> (i32, i32) {
    %c0_i32 = arith.constant 0 : i32
    %c0_i32_0 = arith.constant 0 : i32
    %c0_i32_1 = arith.constant 0 : i32
    return %c0_i32, %c0_i32_0 : i32, i32
  }
  func.func @transform_5(%arg0: i32, %arg1: i32) -> (i32, i32) {
    %c0_i32 = arith.constant 0 : i32
    %c0_i32_0 = arith.constant 0 : i32
    %c0_i32_1 = arith.constant 0 : i32
    return %c0_i32, %c0_i32_0 : i32, i32
  }
  func.func @transform_6(%arg0: i32, %arg1: i32) -> (i32, i32) {
    %c0_i32 = arith.constant 0 : i32
    %c0_i32_0 = arith.constant 0 : i32
    %c0_i32_1 = arith.constant 0 : i32
    return %c0_i32, %c0_i32_0 : i32, i32
  }
  func.func @transform_7(%arg0: i32, %arg1: i32) -> (i32, i32) {
    %c0_i32 = arith.constant 0 : i32
    %c0_i32_0 = arith.constant 0 : i32
    %c0_i32_1 = arith.constant 0 : i32
    return %c0_i32, %c0_i32_0 : i32, i32
  }
  func.func @transform_8(%arg0: i32, %arg1: i32) -> (i32, i32, i32) {
    %c0_i32 = arith.constant 0 : i32
    %c0_i32_0 = arith.constant 0 : i32
    %c0_i32_1 = arith.constant 0 : i32
    return %arg1, %c0_i32, %c0_i32_0 : i32, i32, i32
  }
}

</mosaic_0001>

<llo_original>
// kernel: tpu_custom_call.1
$region0: #{tpu_custom_call.1}
  #allocation0 [shape = 'u32[]', space=smem, size = 0x4, offset = 0x4, fixed_abs, tag = 'smem constant byte address 0x4 - core index']
  #allocation1 [shape = 'u32[144,128]{1,0:T(1,128)}', space=vmem, size = 0x12000, scoped, tag = 'internal scratch']
  #allocation2 [shape = 'f32[4,1]{1,0:T(4,128)}', space=vmem, size = 0x800, scoped, tag = 'scratch operand']
  #allocation3 [shape = 'f32[4,1]{1,0:T(4,128)}', space=vmem, size = 0x800, scoped, tag = 'scratch operand']
  #allocation4 [shape = 'f32[4,1]{1,0:T(4,128)}', space=vmem, size = 0x800, scoped, tag = 'scratch operand']
  #allocation5 [shape = 'f32[4,1]{1,0:T(4,128)}', space=vmem, size = 0x800, scoped, tag = 'scratch operand']
  #allocation6 [shape = 'f32[36,256]{1,0:T(8,128)}', space=vmem, size = 0xa000, scoped, tag = 'scratch operand']
  %s0 = inlined_call_operand.vmem [shape: f32[2,4,256], index: 0, kind: input, shape index: {}]
  %s1 = inlined_call_operand.hbm [shape: f32[9,256], index: 1, kind: input, shape index: {}]
  %s2 = inlined_call_operand.vmem [shape: f32[4,36], index: 2, kind: input, shape index: {}]
  %s3 = inlined_call_operand.vmem [shape: f32[4,1], index: 3, kind: input, shape index: {}]
  %s4 = inlined_call_operand.vmem [shape: f32[4,1], index: 4, kind: input, shape index: {}]
  %s5 = inlined_call_operand.vmem [shape: f32[4,36], index: 5, kind: input, shape index: {}]
  %s6 = inlined_call_operand.vmem [shape: f32[4,1], index: 6, kind: input, shape index: {}]
  %s7 = inlined_call_operand.vmem [shape: f32[4,1], index: 7, kind: input, shape index: {}]
  %s8 = inlined_call_operand.hbm [shape: f32[2,4,256], index: 8, kind: output, shape index: {}]
  %s9 = sld [smem:[#allocation0]]
  $region89: #{tpu_custom_call.1} parent=0
    _
  %s11 = ssub.s32 1, %s9
  %s12 = scalar_select 0, %s11, %s9
  $region1: #{tpu_custom_call.1} parent=0
    #allocation7 [shape = 'u8[16384]{0}', space=vmem, size = 0x4000, scoped, tag = 'input window, operand 1, single buffered']
    #allocation8 [shape = 's32[2]{0}', space=sflag, size = 0x8, scoped, tag = 'scoped memory for tpu_custom_call.1']
    #allocation9 [shape = 's32[2]{0}', space=sflag, size = 0x8, scoped, tag = 'scoped memory for tpu_custom_call.1']
    #allocation10 [shape = 'u8[8192]{0}', space=vmem, size = 0x2000, scoped, tag = 'output window, operand 0']
    %13 = vsyncpa [#allocation8], 0
    %14 = vsyncpa [#allocation9], 0
    %s15 = scalar_lea.sflag [#allocation9], 1
    %16 = vsyncpa %s15, 0
    loop: start=0, step=1, limit=8
    $region2: #{tpu_custom_call.1} parent=1 // loop_pre_header
      _
    $region3: #{tpu_custom_call.1} parent=1 // loop_header
      %s18 = sphi 0, %s22
      %p19 = scmp.ge.s32.totalorder %s18, 8
      %s25 = sphi 0, %s37
      %s26 = sphi 0, %s33
      %s27 = sphi 0, %s25
      %s28 = sphi 0, %s26
      %s29 = sphi 0, %s27
      %s30 = sphi 0, %s28
      %s40 = sphi 0, %s42
      %s43 = sphi 0, %s40
      %s44 = sphi 0, %s43
      %s60 = sphi 0, %s44
      %s64 = sphi 0, %s64
      %s66 = sphi 0, %s64
      %s67 = sphi 0, %s66
      %s81 = sphi 0, %s67
      %s85 = sphi 0, %s85
      %s87 = sphi 0, %s85
      %s88 = sphi 0, %s87
      %s102 = sphi 0, %s88
      %s106 = sphi 0, %s106
      %s108 = sphi 0, %s106
      %s109 = sphi 0, %s108
      %s123 = sphi 0, %s109
      %s127 = sphi 0, %s127
      %s129 = sphi 0, %s127
      %s130 = sphi 0, %s129
      %s144 = sphi 0, %s130
      %s148 = sphi 0, %s148
      %s150 = sphi 0, %s148
      %s151 = sphi 0, %s150
      %s165 = sphi 0, %s151
      %s169 = sphi 0, %s169
      %s171 = sphi 0, %s169
      %s172 = sphi 0, %s171
      %s186 = sphi 0, %s172
      %s190 = sphi 0, %s190
      %s192 = sphi 0, %s190
      %s193 = sphi 0, %s192
      %s207 = sphi 0, %s193
      %s213 = sphi 0, %s215
      %s216 = sphi 0, %s213
      %s217 = sphi 0, %s216
      %s233 = sphi 0, %s217
    $region4: #{tpu_custom_call.1} parent=1 // loop_header_branch
      %21 = sbr.rel (%p19) target = $region8
    $region5: #{tpu_custom_call.1} parent=1 // loop_body
      %s23 = ssub.s32 %s18, 1
      %s24 = ssub.s32 %s18, 2
      %s31 = sadd.s32 1, %s26
      %p32 = scmp.ge.s32.totalorder %s31, 2
      %s33 = scalar_select %p32, 0, %s31
      %s34 = sadd.s32 1, %s25
      %s35 = scalar_select %p32, %s34, %s25
      %p36 = scmp.ge.s32.totalorder %s35, 3
      %s37 = scalar_select %p36, 0, %s35
      %s38 = ssub.s32 %s26, %s33
      %p39 = scmp.eq.s32.totalorder %s38, 0
      %s41 = sadd.s32 %s40, 1
      %s42 = scalar_select %p39, %s40, %s41
      %p45 = pneg %p39
      %p46 = scmp.eq.s32.totalorder %s18, 5
      %p47 = por %p45, %p46
      %p48 = scmp.ne.s32.totalorder %s40, %s43
      %p49 = scmp.eq.s32.totalorder %s18, 0
      %p50 = por %p48, %p49
      %p51 = scmp.ne.s32.totalorder %s40, %s43
      %p52 = scmp.eq.s32.totalorder %s23, 5
      %p53 = por %p51, %p52
      %p54 = scmp.ne.s32.totalorder %s43, %s44
      %p55 = scmp.eq.s32.totalorder %s23, 0
      %p56 = por %p54, %p55
      %p57 = scmp.ne.s32.totalorder %s43, %s44
      %p58 = scmp.eq.s32.totalorder %s24, 5
      %p59 = por %p57, %p58
      %p61 = scmp.ne.s32.totalorder %s44, %s60
      %p62 = scmp.eq.s32.totalorder %s24, 0
      %p63 = por %p61, %p62
      %s65 = sadd.s32 %s64, 1
      %p68 = scmp.eq.s32.totalorder %s18, 5
      %p69 = scmp.ne.s32.totalorder %s64, %s66
      %p70 = scmp.eq.s32.totalorder %s18, 0
      %p71 = por %p69, %p70
      %p72 = scmp.ne.s32.totalorder %s64, %s66
      %p73 = scmp.eq.s32.totalorder %s23, 5
      %p74 = por %p72, %p73
      %p75 = scmp.ne.s32.totalorder %s66, %s67
      %p76 = scmp.eq.s32.totalorder %s23, 0
      %p77 = por %p75, %p76
      %p78 = scmp.ne.s32.totalorder %s66, %s67
      %p79 = scmp.eq.s32.totalorder %s24, 5
      %p80 = por %p78, %p79
      %p82 = scmp.ne.s32.totalorder %s67, %s81
      %p83 = scmp.eq.s32.totalorder %s24, 0
      %p84 = por %p82, %p83
      %s86 = sadd.s32 %s85, 1
      %p89 = scmp.eq.s32.totalorder %s18, 5
      %p90 = scmp.ne.s32.totalorder %s85, %s87
      %p91 = scmp.eq.s32.totalorder %s18, 0
      %p92 = por %p90, %p91
      %p93 = scmp.ne.s32.totalorder %s85, %s87
      %p94 = scmp.eq.s32.totalorder %s23, 5
      %p95 = por %p93, %p94
      %p96 = scmp.ne.s32.totalorder %s87, %s88
      %p97 = scmp.eq.s32.totalorder %s23, 0
      %p98 = por %p96, %p97
      %p99 = scmp.ne.s32.totalorder %s87, %s88
      %p100 = scmp.eq.s32.totalorder %s24, 5
      %p101 = por %p99, %p100
      %p103 = scmp.ne.s32.totalorder %s88, %s102
      %p104 = scmp.eq.s32.totalorder %s24, 0
      %p105 = por %p103, %p104
      %s107 = sadd.s32 %s106, 1
      %p110 = scmp.eq.s32.totalorder %s18, 5
      %p111 = scmp.ne.s32.totalorder %s106, %s108
      %p112 = scmp.eq.s32.totalorder %s18, 0
      %p113 = por %p111, %p112
      %p114 = scmp.ne.s32.totalorder %s106, %s108
      %p115 = scmp.eq.s32.totalorder %s23, 5
      %p116 = por %p114, %p115
      %p117 = scmp.ne.s32.totalorder %s108, %s109
      %p118 = scmp.eq.s32.totalorder %s23, 0
      %p119 = por %p117, %p118
      %p120 = scmp.ne.s32.totalorder %s108, %s109
      %p121 = scmp.eq.s32.totalorder %s24, 5
      %p122 = por %p120, %p121
      %p124 = scmp.ne.s32.totalorder %s109, %s123
      %p125 = scmp.eq.s32.totalorder %s24, 0
      %p126 = por %p124, %p125
      %s128 = sadd.s32 %s127, 1
      %p131 = scmp.eq.s32.totalorder %s18, 5
      %p132 = scmp.ne.s32.totalorder %s127, %s129
      %p133 = scmp.eq.s32.totalorder %s18, 0
      %p134 = por %p132, %p133
      %p135 = scmp.ne.s32.totalorder %s127, %s129
      %p136 = scmp.eq.s32.totalorder %s23, 5
      %p137 = por %p135, %p136
      %p138 = scmp.ne.s32.totalorder %s129, %s130
      %p139 = scmp.eq.s32.totalorder %s23, 0
      %p140 = por %p138, %p139
      %p141 = scmp.ne.s32.totalorder %s129, %s130
      %p142 = scmp.eq.s32.totalorder %s24, 5
      %p143 = por %p141, %p142
      %p145 = scmp.ne.s32.totalorder %s130, %s144
      %p146 = scmp.eq.s32.totalorder %s24, 0
      %p147 = por %p145, %p146
      %s149 = sadd.s32 %s148, 1
      %p152 = scmp.eq.s32.totalorder %s18, 5
      %p153 = scmp.ne.s32.totalorder %s148, %s150
      %p154 = scmp.eq.s32.totalorder %s18, 0
      %p155 = por %p153, %p154
      %p156 = scmp.ne.s32.totalorder %s148, %s150
      %p157 = scmp.eq.s32.totalorder %s23, 5
      %p158 = por %p156, %p157
      %p159 = scmp.ne.s32.totalorder %s150, %s151
      %p160 = scmp.eq.s32.totalorder %s23, 0
      %p161 = por %p159, %p160
      %p162 = scmp.ne.s32.totalorder %s150, %s151
      %p163 = scmp.eq.s32.totalorder %s24, 5
      %p164 = por %p162, %p163
      %p166 = scmp.ne.s32.totalorder %s151, %s165
      %p167 = scmp.eq.s32.totalorder %s24, 0
      %p168 = por %p166, %p167
      %s170 = sadd.s32 %s169, 1
      %p173 = scmp.eq.s32.totalorder %s18, 5
      %p174 = scmp.ne.s32.totalorder %s169, %s171
      %p175 = scmp.eq.s32.totalorder %s18, 0
      %p176 = por %p174, %p175
      %p177 = scmp.ne.s32.totalorder %s169, %s171
      %p178 = scmp.eq.s32.totalorder %s23, 5
      %p179 = por %p177, %p178
      %p180 = scmp.ne.s32.totalorder %s171, %s172
      %p181 = scmp.eq.s32.totalorder %s23, 0
      %p182 = por %p180, %p181
      %p183 = scmp.ne.s32.totalorder %s171, %s172
      %p184 = scmp.eq.s32.totalorder %s24, 5
      %p185 = por %p183, %p184
      %p187 = scmp.ne.s32.totalorder %s172, %s186
      %p188 = scmp.eq.s32.totalorder %s24, 0
      %p189 = por %p187, %p188
      %s191 = sadd.s32 %s190, 1
      %p194 = scmp.eq.s32.totalorder %s18, 5
      %p195 = scmp.ne.s32.totalorder %s190, %s192
      %p196 = scmp.eq.s32.totalorder %s18, 0
      %p197 = por %p195, %p196
      %p198 = scmp.ne.s32.totalorder %s190, %s192
      %p199 = scmp.eq.s32.totalorder %s23, 5
      %p200 = por %p198, %p199
      %p201 = scmp.ne.s32.totalorder %s192, %s193
      %p202 = scmp.eq.s32.totalorder %s23, 0
      %p203 = por %p201, %p202
      %p204 = scmp.ne.s32.totalorder %s192, %s193
      %p205 = scmp.eq.s32.totalorder %s24, 5
      %p206 = por %p204, %p205
      %p208 = scmp.ne.s32.totalorder %s193, %s207
      %p209 = scmp.eq.s32.totalorder %s24, 0
      %p210 = por %p208, %p209
      %s211 = ssub.s32 %s26, %s33
      %p212 = scmp.eq.s32.totalorder %s211, 0
      %s214 = sadd.s32 %s213, 1
      %s215 = scalar_select %p212, %s213, %s214
      %p218 = pneg %p212
      %p219 = scmp.eq.s32.totalorder %s18, 5
      %p220 = por %p218, %p219
      %p221 = scmp.ne.s32.totalorder %s213, %s216
      %p222 = scmp.eq.s32.totalorder %s18, 0
      %p223 = por %p221, %p222
      %p224 = scmp.ne.s32.totalorder %s213, %s216
      %p225 = scmp.eq.s32.totalorder %s23, 5
      %p226 = por %p224, %p225
      %p227 = scmp.ne.s32.totalorder %s216, %s217
      %p228 = scmp.eq.s32.totalorder %s23, 0
      %p229 = por %p227, %p228
      %p230 = scmp.ne.s32.totalorder %s216, %s217
      %p231 = scmp.eq.s32.totalorder %s24, 5
      %p232 = por %p230, %p231
      %p234 = scmp.ne.s32.totalorder %s217, %s233
      %p235 = scmp.eq.s32.totalorder %s24, 0
      %p236 = por %p234, %p235
      %p237 = scmp.le.s32.totalorder 1, %s18
      %p238 = scmp.lt.s32.totalorder %s18, 7
      %p239 = pnand %p237, %p238
      %p240 = pneg %p239
      // Predicated region
      $region9: #{tpu_custom_call.1} parent=5 // pred_check
        _
      $region10: #{tpu_custom_call.1} parent=5 // pred_check_branch
        %242 = sbr.rel (%p239) target = $region12
      $region11: #{tpu_custom_call.1} parent=5 // pred_region
        %s243 = ssub.s32 %s18, 1
        // Predicated region
        $region13: #{tpu_custom_call.1} parent=11 // pred_check
          %p244 = pneg %p77
        $region14: #{tpu_custom_call.1} parent=11 // pred_check_branch
          %246 = sbr.rel (%p244) target = $region16
        $region15: #{tpu_custom_call.1} parent=11 // pred_region
          %s248 = ssub.s32 512, 512
          %249 = vsyncadd [#allocation8], %s248
          %s250 = sshll.u32 [#allocation7], 4
          %s251 = int_to_ptr.vmem [resolvable:$true] %s250
          %256 = dma.hbm_to_vmem [thread:$0]  %s1, 512, %s251, [#allocation8], 256, 256, 16
        $region16: #{tpu_custom_call.1} parent=11 // pred_fallthru
          _
        // Predicated region
        $region17: #{tpu_custom_call.1} parent=11 // pred_check
          %p257 = pneg %p98
        $region18: #{tpu_custom_call.1} parent=11 // pred_check_branch
          %259 = sbr.rel (%p257) target = $region20
        $region19: #{tpu_custom_call.1} parent=11 // pred_region
          _
        $region20: #{tpu_custom_call.1} parent=11 // pred_fallthru
          _
        // Predicated region
        $region21: #{tpu_custom_call.1} parent=11 // pred_check
          %p260 = pneg %p119
        $region22: #{tpu_custom_call.1} parent=11 // pred_check_branch
          %262 = sbr.rel (%p260) target = $region24
        $region23: #{tpu_custom_call.1} parent=11 // pred_region
          _
        $region24: #{tpu_custom_call.1} parent=11 // pred_fallthru
          _
        // Predicated region
        $region25: #{tpu_custom_call.1} parent=11 // pred_check
          %p263 = pneg %p140
        $region26: #{tpu_custom_call.1} parent=11 // pred_check_branch
          %265 = sbr.rel (%p263) target = $region28
        $region27: #{tpu_custom_call.1} parent=11 // pred_region
          _
        $region28: #{tpu_custom_call.1} parent=11 // pred_fallthru
          _
        // Predicated region
        $region29: #{tpu_custom_call.1} parent=11 // pred_check
          %p266 = pneg %p161
        $region30: #{tpu_custom_call.1} parent=11 // pred_check_branch
          %268 = sbr.rel (%p266) target = $region32
        $region31: #{tpu_custom_call.1} parent=11 // pred_region
          _
        $region32: #{tpu_custom_call.1} parent=11 // pred_fallthru
          _
        // Predicated region
        $region33: #{tpu_custom_call.1} parent=11 // pred_check
          %p269 = pneg %p182
        $region34: #{tpu_custom_call.1} parent=11 // pred_check_branch
          %271 = sbr.rel (%p269) target = $region36
        $region35: #{tpu_custom_call.1} parent=11 // pred_region
          _
        $region36: #{tpu_custom_call.1} parent=11 // pred_fallthru
          _
        // Predicated region
        $region37: #{tpu_custom_call.1} parent=11 // pred_check
          %p272 = pneg %p203
        $region38: #{tpu_custom_call.1} parent=11 // pred_check_branch
          %274 = sbr.rel (%p272) target = $region40
        $region39: #{tpu_custom_call.1} parent=11 // pred_region
          _
        $region40: #{tpu_custom_call.1} parent=11 // pred_fallthru
          _
      $region12: #{tpu_custom_call.1} parent=5 // pred_fallthru
        _
      %p275 = scmp.lt.s32.totalorder %s18, 6
      // Predicated region
      $region41: #{tpu_custom_call.1} parent=5 // pred_check
        %p276 = pneg %p275
      $region42: #{tpu_custom_call.1} parent=5 // pred_check_branch
        %278 = sbr.rel (%p276) target = $region44
      $region43: #{tpu_custom_call.1} parent=5 // pred_region
        // Predicated region
        $region45: #{tpu_custom_call.1} parent=43 // pred_check
          %p279 = pneg %p50
        $region46: #{tpu_custom_call.1} parent=43 // pred_check_branch
          %281 = sbr.rel (%p279) target = $region48
        $region47: #{tpu_custom_call.1} parent=43 // pred_region
          %p282 = scmp.lt.s32.totalorder %s26, 1
          %s283 = scalar_select %p282, %s26, 1
          %s284 = smul.addr %s283, 2
          %s285 = smul.addr %s284, 4
          %s286 = scalar_lea.vmem %s0, %s285
        $region48: #{tpu_custom_call.1} parent=43 // pred_fallthru
          _
      $region44: #{tpu_custom_call.1} parent=5 // pred_fallthru
        _
      %p287 = scmp.le.s32.totalorder 1, %s18
      %p288 = scmp.lt.s32.totalorder %s18, 7
      %p289 = pnand %p287, %p288
      %p290 = pneg %p289
      // Predicated region
      $region49: #{tpu_custom_call.1} parent=5 // pred_check
        _
      $region50: #{tpu_custom_call.1} parent=5 // pred_check_branch
        %292 = sbr.rel (%p289) target = $region52
      $region51: #{tpu_custom_call.1} parent=5 // pred_region
        %s293 = ssub.s32 %s18, 1
        // Predicated region
        $region53: #{tpu_custom_call.1} parent=51 // pred_check
          %p294 = pneg %p77
        $region54: #{tpu_custom_call.1} parent=51 // pred_check_branch
          %296 = sbr.rel (%p294) target = $region56
        $region55: #{tpu_custom_call.1} parent=51 // pred_region
          %297 = dma.done [#allocation8], 512
        $region56: #{tpu_custom_call.1} parent=51 // pred_fallthru
          _
        %p298 = scmp.lt.s32.totalorder %s28, 1
        %s299 = scalar_select %p298, %s28, 1
        %s300 = smul.addr %s299, 2
        %s301 = smul.addr %s300, 4
        %s302 = scalar_lea.vmem %s0, %s301
        %p303 = pneg %p56
        %p304 = pneg %p53
        %p305 = pneg %p77
        %p306 = pneg %p74
        %p307 = pneg %p98
        %p308 = pneg %p95
        %p309 = pneg %p119
        %p310 = pneg %p116
        %p311 = pneg %p140
        %p312 = pneg %p137
        %p313 = pneg %p161
        %p314 = pneg %p158
        %p315 = pneg %p182
        %p316 = pneg %p179
        %p317 = pneg %p203
        %p318 = pneg %p200
        %p319 = pneg %p229
        %p320 = pneg %p226
        %s321 = sand.u32 %s216, 1
        %s322 = scalar_lea.sflag [#allocation9], %s321
        %s323 = sand.u32 %s216, 1
        %s324 = smul.addr %s323, 8
        %s325 = scalar_lea.vmem [#allocation10], %s324
        %p326 = scmp.lt.s32.totalorder %s28, 1
        %s327 = scalar_select %p326, %s28, 1
        %s328 = smul.addr %s327, 2
        %s329 = smul.addr %s328, 4
        %s330 = scalar_lea.vmem %s0, %s329
        %p331 = scmp.eq.s32.totalorder %s27, 0
        %p332 = scmp.eq.s32.totalorder %s28, 0
        %p333 = pnand %p331, %p332
        %p334 = pneg %p333
        // Predicated region
        $region57: #{tpu_custom_call.1} parent=51 // pred_check
          _
        $region58: #{tpu_custom_call.1} parent=51 // pred_check_branch
          %336 = sbr.rel (%p333) target = $region60
        $region59: #{tpu_custom_call.1} parent=51 // pred_region
          %vm337 = vcmask 3072
          %338 = vst.msk [vmem:[#allocation2] sm:$0xf] %vm337, 0.0
          %339 = vst.msk [vmem:[#allocation3] sm:$0xf] %vm337, 0.0
          %340 = vst.msk [vmem:[#allocation4] sm:$0xf] %vm337, 0.0
          %341 = vst.msk [vmem:[#allocation5] sm:$0xf] %vm337, 0.0
          %342 = vst [vmem:[#allocation6] sm:$0xff] 0.0
          %343 = vst [vmem:[#allocation6 + $0x8] sm:$0xff] 0.0
          %344 = vst [vmem:[#allocation6 + $0x10] sm:$0xff] 0.0
          %345 = vst [vmem:[#allocation6 + $0x18] sm:$0xff] 0.0
          %346 = vst [vmem:[#allocation6 + $0x20] sm:$0xff] 0.0
          %347 = vst [vmem:[#allocation6 + $0x28] sm:$0xff] 0.0
          %348 = vst [vmem:[#allocation6 + $0x30] sm:$0xff] 0.0
          %349 = vst [vmem:[#allocation6 + $0x38] sm:$0xff] 0.0
          %350 = vst [vmem:[#allocation6 + $0x40] sm:$0xf] 0.0
          %351 = vst [vmem:[#allocation6 + $0x48] sm:$0xf] 0.0
        $region60: #{tpu_custom_call.1} parent=51 // pred_fallthru
          _
        %v352 = vld [vmem:[%s330] sm:$0xff]
        %v353 = vld [vmem:[#allocation7] ss:$8 sm:$0x3]
        %v355 = vlaneseq
        %v356 = vshrl.u32 %v355, 7
        %v357 = vsub.s32 0, %v356
        %v358 = vrot.slane %v353, %v357
        %v359 = vlaneseq
        %v360 = vshrl.u32 %v359, 7
        %v361 = vsub.s32 1, %v360
        %v362 = vrot.slane %v353, %v361
        %v363 = vcombine.low %v358, %v362
        %364 = vrot.lane.b32.xlu0 %v363, 111
        %v365 = vpop.permute.xlu0 %364
        %v366 = vrot.slane %v365, 4
        %vm367 = vcmask 908288
        %v368 = vsel %vm367, %v365, %v366
        %v370 = vmul.f32 %v352, %v368
        %v372 = vcombine.high %v370, %v370
        %373 = vrot.lane.b32.xlu0 %v370, 17
        %v374 = vpop.permute.xlu0 %373
        %375 = vrot.lane.b32.xlu0 %v372, 17
        %v376 = vpop.permute.xlu0 %375
        %vm377 = vcmask 138240
        %v378 = vsel %vm377, %v374, %v376
        %vm381 = vcmask 1043592
        %382 = vst.msk [vmem:[#allocation6] sm:$0xf] %vm381, %v374
        %383 = vst [vmem:[#allocation6 + $0x8] sm:$0xf] %v378
        %s384 = scalar_lea.vmem [#allocation7], 1
        %v385 = vld [vmem:[%s384] ss:$8 sm:$0x3]
        %v387 = vlaneseq
        %v388 = vshrl.u32 %v387, 7
        %v389 = vsub.s32 0, %v388
        %v390 = vrot.slane %v385, %v389
        %v391 = vlaneseq
        %v392 = vshrl.u32 %v391, 7
        %v393 = vsub.s32 1, %v392
        %v394 = vrot.slane %v385, %v393
        %v395 = vcombine.low %v390, %v394
        %396 = vrot.lane.b32.xlu0 %v395, 112
        %v397 = vpop.permute.xlu0 %396
        %v398 = vrot.slane %v397, 4
        %vm399 = vcmask 916480
        %v400 = vsel %vm399, %v397, %v398
        %v402 = vmul.f32 %v352, %v400
        %v404 = vcombine.low %v402, %v402
        %405 = vrot.lane.b32.xlu0 %v404, 16
        %v406 = vpop.permute.xlu0 %405
        %407 = vrot.lane.b32.xlu0 %v402, 16
        %v408 = vpop.permute.xlu0 %407
        %vm409 = vcmask 130048
        %v410 = vsel %vm409, %v406, %v408
        %vm413 = vcmask 1047684
        %414 = vst.msk [vmem:[#allocation6] sm:$0xf0] %vm413, %v406
        %415 = vst [vmem:[#allocation6 + $0x8] sm:$0xf0] %v410
        %s416 = scalar_lea.vmem [#allocation7], 2
        %v417 = vld [vmem:[%s416] ss:$8 sm:$0x3]
        %v419 = vlaneseq
        %v420 = vshrl.u32 %v419, 7
        %v421 = vsub.s32 0, %v420
        %v422 = vrot.slane %v417, %v421
        %v423 = vlaneseq
        %v424 = vshrl.u32 %v423, 7
        %v425 = vsub.s32 1, %v424
        %v426 = vrot.slane %v417, %v425
        %v427 = vcombine.low %v422, %v426
        %428 = vrot.lane.b32.xlu0 %v427, 113
        %v429 = vpop.permute.xlu0 %428
        %v430 = vrot.slane %v429, 4
        %vm431 = vcmask 924672
        %v432 = vsel %vm431, %v429, %v430
        %v434 = vmul.f32 %v352, %v432
        %v436 = vcombine.high %v434, %v434
        %437 = vrot.lane.b32.xlu0 %v434, 15
        %v438 = vpop.permute.xlu0 %437
        %439 = vrot.lane.b32.xlu0 %v436, 15
        %v440 = vpop.permute.xlu0 %439
        %vm441 = vcmask 121856
        %v442 = vsel %vm441, %v438, %v440
        %vm445 = vcmask 1043576
        %446 = vst.msk [vmem:[#allocation6 + $0x10] sm:$0xf] %vm445, %v438
        %447 = vst [vmem:[#allocation6 + $0x18] sm:$0xf] %v442
        %s448 = scalar_lea.vmem [#allocation7], 3
        %v449 = vld [vmem:[%s448] ss:$8 sm:$0x3]
        %v451 = vlaneseq
        %v452 = vshrl.u32 %v451, 7
        %v453 = vsub.s32 0, %v452
        %v454 = vrot.slane %v449, %v453
        %v455 = vlaneseq
        %v456 = vshrl.u32 %v455, 7
        %v457 = vsub.s32 1, %v456
        %v458 = vrot.slane %v449, %v457
        %v459 = vcombine.low %v454, %v458
        %460 = vrot.lane.b32.xlu0 %v459, 127
        %v461 = vpop.permute.xlu0 %460
        %v462 = vrot.slane %v461, 4
        %vm463 = vcmask 1039360
        %v464 = vsel %vm463, %v461, %v462
        %v466 = vmul.f32 %v352, %v464
        %v468 = vcombine.low %v466, %v466
        %469 = vrot.lane.b32.xlu0 %v468, 1
        %v470 = vpop.permute.xlu0 %469
        %471 = vrot.lane.b32.xlu0 %v466, 1
        %v472 = vpop.permute.xlu0 %471
        %vm473 = vcmask 7168
        %v474 = vsel %vm473, %v470, %v472
        %vm477 = vcmask 1047564
        %478 = vst.msk [vmem:[#allocation6 + $0x10] sm:$0xf0] %vm477, %v470
        %479 = vst [vmem:[#allocation6 + $0x18] sm:$0xf0] %v474
        %s480 = scalar_lea.vmem [#allocation7], 4
        %v481 = vld [vmem:[%s480] ss:$8 sm:$0x3]
        %v483 = vlaneseq
        %v484 = vshrl.u32 %v483, 7
        %v485 = vsub.s32 0, %v484
        %v486 = vrot.slane %v481, %v485
        %v487 = vlaneseq
        %v488 = vshrl.u32 %v487, 7
        %v489 = vsub.s32 1, %v488
        %v490 = vrot.slane %v481, %v489
        %v491 = vcombine.low %v486, %v490
        %v493 = vmul.f32 %v352, %v491
        %v495 = vcombine.high %v493, %v493
        %497 = vst [vmem:[#allocation6 + $0x20] sm:$0xf] %v493
        %498 = vst [vmem:[#allocation6 + $0x28] sm:$0xf] %v495
        %s499 = scalar_lea.vmem [#allocation7], 5
        %v500 = vld [vmem:[%s499] ss:$8 sm:$0x3]
        %v502 = vlaneseq
        %v503 = vshrl.u32 %v502, 7
        %v504 = vsub.s32 0, %v503
        %v505 = vrot.slane %v500, %v504
        %v506 = vlaneseq
        %v507 = vshrl.u32 %v506, 7
        %v508 = vsub.s32 1, %v507
        %v509 = vrot.slane %v500, %v508
        %v510 = vcombine.low %v505, %v509
        %511 = vrot.lane.b32.xlu0 %v510, 1
        %v512 = vpop.permute.xlu0 %511
        %v513 = vrot.slane %v512, 4
        %v514 = vsel %vm473, %v513, %v512
        %v516 = vmul.f32 %v352, %v514
        %v518 = vcombine.low %v516, %v516
        %519 = vrot.lane.b32.xlu0 %v518, 127
        %v520 = vpop.permute.xlu0 %519
        %521 = vrot.lane.b32.xlu0 %v516, 127
        %v522 = vpop.permute.xlu0 %521
        %v523 = vsel %vm463, %v520, %v522
        %526 = vst [vmem:[#allocation6 + $0x20] sm:$0xf0] %v523
        %vm527 = vcmask 1039364
        %528 = vst.msk [vmem:[#allocation6 + $0x28] sm:$0xf0] %vm527, %v522
        %s529 = scalar_lea.vmem [#allocation7], 6
        %v530 = vld [vmem:[%s529] ss:$8 sm:$0x3]
        %v532 = vlaneseq
        %v533 = vshrl.u32 %v532, 7
        %v534 = vsub.s32 0, %v533
        %v535 = vrot.slane %v530, %v534
        %v536 = vlaneseq
        %v537 = vshrl.u32 %v536, 7
        %v538 = vsub.s32 1, %v537
        %v539 = vrot.slane %v530, %v538
        %v540 = vcombine.low %v535, %v539
        %541 = vrot.lane.b32.xlu0 %v540, 15
        %v542 = vpop.permute.xlu0 %541
        %v543 = vrot.slane %v542, 4
        %v544 = vsel %vm441, %v543, %v542
        %v546 = vmul.f32 %v352, %v544
        %v548 = vcombine.high %v546, %v546
        %549 = vrot.lane.b32.xlu0 %v546, 113
        %v550 = vpop.permute.xlu0 %549
        %551 = vrot.lane.b32.xlu0 %v548, 113
        %v552 = vpop.permute.xlu0 %551
        %v553 = vsel %vm431, %v550, %v552
        %556 = vst [vmem:[#allocation6 + $0x30] sm:$0xf] %v553
        %vm557 = vcmask 920576
        %558 = vst.msk [vmem:[#allocation6 + $0x38] sm:$0xf] %vm557, %v552
        %s559 = scalar_lea.vmem [#allocation7], 7
        %v560 = vld [vmem:[%s559] ss:$8 sm:$0x3]
        %v562 = vlaneseq
        %v563 = vshrl.u32 %v562, 7
        %v564 = vsub.s32 0, %v563
        %v565 = vrot.slane %v560, %v564
        %v566 = vlaneseq
        %v567 = vshrl.u32 %v566, 7
        %v568 = vsub.s32 1, %v567
        %v569 = vrot.slane %v560, %v568
        %v570 = vcombine.low %v565, %v569
        %571 = vrot.lane.b32.xlu0 %v570, 16
        %v572 = vpop.permute.xlu0 %571
        %v573 = vrot.slane %v572, 4
        %v574 = vsel %vm409, %v573, %v572
        %v576 = vmul.f32 %v352, %v574
        %v578 = vcombine.low %v576, %v576
        %579 = vrot.lane.b32.xlu0 %v578, 112
        %v580 = vpop.permute.xlu0 %579
        %581 = vrot.lane.b32.xlu0 %v576, 112
        %v582 = vpop.permute.xlu0 %581
        %v583 = vsel %vm399, %v580, %v582
        %586 = vst [vmem:[#allocation6 + $0x30] sm:$0xf0] %v583
        %vm587 = vcmask 916484
        %588 = vst.msk [vmem:[#allocation6 + $0x38] sm:$0xf0] %vm587, %v582
        %s589 = scalar_lea.vmem [#allocation7], 16
        %v590 = vld [vmem:[%s589] ss:$8 sm:$0x3]
        %v592 = vlaneseq
        %v593 = vshrl.u32 %v592, 7
        %v594 = vsub.s32 0, %v593
        %v595 = vrot.slane %v590, %v594
        %v596 = vlaneseq
        %v597 = vshrl.u32 %v596, 7
        %v598 = vsub.s32 1, %v597
        %v599 = vrot.slane %v590, %v598
        %v600 = vcombine.low %v595, %v599
        %601 = vrot.lane.b32.xlu0 %v600, 17
        %v602 = vpop.permute.xlu0 %601
        %v603 = vrot.slane %v602, 4
        %v604 = vsel %vm377, %v603, %v602
        %v606 = vmul.f32 %v352, %v604
        %v608 = vcombine.high %v606, %v606
        %609 = vrot.lane.b32.xlu0 %v606, 111
        %v610 = vpop.permute.xlu0 %609
        %611 = vrot.lane.b32.xlu0 %v608, 111
        %v612 = vpop.permute.xlu0 %611
        %v613 = vsel %vm367, %v610, %v612
        %616 = vst [vmem:[#allocation6 + $0x40] sm:$0xf] %v613
        %vm617 = vcmask 904192
        %618 = vst.msk [vmem:[#allocation6 + $0x48] sm:$0xf] %vm617, %v612
        %v619 = vld [vmem:[%s2] sm:$0xf]
        %v620 = vld [vmem:[#allocation6] sm:$0xff]
        %v621 = vld [vmem:[#allocation6 + $0x8] sm:$0xff]
        %v622 = vld [vmem:[#allocation6 + $0x10] sm:$0xff]
        %v623 = vld [vmem:[#allocation6 + $0x18] sm:$0xff]
        %v624 = vld [vmem:[#allocation6 + $0x20] sm:$0xff]
        %v625 = vld [vmem:[#allocation6 + $0x28] sm:$0xff]
        %v626 = vld [vmem:[#allocation6 + $0x30] sm:$0xff]
        %v627 = vld [vmem:[#allocation6 + $0x38] sm:$0xff]
        %v628 = vld [vmem:[#allocation6 + $0x40] sm:$0xf]
        %v629 = vld [vmem:[#allocation6 + $0x48] sm:$0xf]
        %vm630 = vcmask 293888
        %v632 = vsel %vm630, %v619, 0
        %vm634 = vcmask 1043456
        %v636 = vsel %vm634, %v628, 0
        %v639 = vsel %vm634, %v629, 0
        %641 = vmatprep.subr.mxu0 %v621
        %642 = vmatpush1.msra.mxu0 %v620
        %643 = vmatprep.subr.mxu0 %v623
        %644 = vmatpush1.msra.mxu0 %v622
        %645 = vmatprep.subr.mxu0 %v625
        %646 = vmatpush1.msra.mxu0 %v624
        %647 = vmatprep.subr.mxu0 %v627
        %648 = vmatpush1.msra.mxu0 %v626
        %649 = vmatprep.subr.mxu0 %v639
        %650 = vmatpush1.msra.mxu0 %v636
        %651 = vmatprep.subr.mxu0 0.0
        %652 = vmatpush1.msra.mxu0 0.0
        %653 = vmatprep.subr.mxu0 0.0
        %654 = vmatpush1.msra.mxu0 0.0
        %655 = vmatprep.subr.mxu0 0.0
        %656 = vmatpush1.msra.mxu0 0.0
        %657 = vmatprep.subr.mxu0 0.0
        %658 = vmatpush1.msra.mxu0 0.0
        %659 = vmatprep.subr.mxu0 0.0
        %660 = vmatpush1.msra.mxu0 0.0
        %661 = vmatprep.subr.mxu0 0.0
        %662 = vmatpush1.msra.mxu0 0.0
        %663 = vmatprep.subr.mxu0 0.0
        %664 = vmatpush1.msra.mxu0 0.0
        %665 = vmatprep.subr.mxu0 0.0
        %666 = vmatpush1.msra.mxu0 0.0
        %667 = vmatprep.subr.mxu0 0.0
        %668 = vmatpush1.msra.mxu0 0.0
        %669 = vmatprep.subr.mxu0 0.0
        %670 = vmatpush1.msra.mxu0 0.0
        %671 = vmatprep.subr.mxu0 0.0
        %672 = vmatpush1.msra.mxu0 0.0
        %673 = vmatprep.subr.mxu0 0.0
        %674 = vmatpush1.msra.mxu0 0.0
        %675 = vmatprep.subr.mxu0 0.0
        %676 = vmatpush1.msra.mxu0 0.0
        %677 = vmatprep.subr.mxu0 0.0
        %678 = vmatpush1.msra.mxu0 0.0
        %679 = vmatprep.subr.mxu0 0.0
        %680 = vmatpush1.msra.mxu0 0.0
        %681 = vmatprep.subr.mxu0 0.0
        %682 = vmatpush1.msra.mxu0 0.0
        %683 = vmatprep.subr.mxu0 0.0
        %684 = vmatpush1.msra.mxu0 0.0
        %685 = vmatprep.subr.mxu0 0.0
        %686 = vmatpush1.msra.mxu0 0.0
        %687 = vmatprep.subr.mxu0 0.0
        %688 = vmatpush1.msra.mxu0 0.0
        %689 = vmatprep.subr.mxu0 0.0
        %690 = vmatpush1.msra.mxu0 0.0
        %691 = vmatprep.subr.mxu0 0.0
        %692 = vmatpush1.msra.mxu0 0.0
        %693 = vmatprep.subr.mxu0 0.0
        %694 = vmatpush1.msra.mxu0 0.0
        %695 = vmatprep.subr.mxu0 0.0
        %696 = vmatpush1.msra.mxu0 0.0
        %697 = vmatprep.subr.mxu0 0.0
        %698 = vmatpush1.msra.mxu0 0.0
        %699 = vmatprep.subr.mxu0 0.0
        %700 = vmatpush1.msra.mxu0 0.0
        %701 = vmatprep.subr.mxu0 0.0
        %702 = vmatpush1.msra.mxu0 0.0
        %703 = vmatprep.subr.mxu0 0.0
        %704 = vmatpush1.msra.mxu0 0.0
        %705 = vmatprep.mubr.f32.mxu0 0.0
        %706 = vmatmul.mubr.f32.gmra.mrb[0].mxu0 %v632
        %v707 = vpop.f32.mrb[0].mxu0
        %v708 = vadd.f32 0.0, %v707
        %v709 = vpop.f32.mrb[0].mxu0
        %v710 = vadd.f32 0.0, %v709
        %711 = vdwg.mxu0
        // Predicated region
        $region61: #{tpu_custom_call.1} parent=51 // pred_check
          %p712 = pneg %p331
        $region62: #{tpu_custom_call.1} parent=51 // pred_check_branch
          %714 = sbr.rel (%p712) target = $region64
        $region63: #{tpu_custom_call.1} parent=51 // pred_region
          %v715 = vld [vmem:[#allocation2] sm:$0xf]
          %v716 = vsel %vm634, %v708, 0.0
          %v717 = vsel %vm634, %v710, 0.0
          %v718 = vadd.f32 %v716, %v717
          %719 = vadd.xlane.f32.xlu0 %v718
          %v720 = vpop.xlane.xlu0 %719
          %v721 = vadd.f32 %v715, %v720
          %vm722 = vcmask 3072
          %723 = vst.msk [vmem:[#allocation2] sm:$0xf] %vm722, %v721
          %v724 = vld [vmem:[#allocation3] sm:$0xf]
          %v725 = vmul.f32 %v708, %v708
          %v726 = vmul.f32 %v710, %v710
          %v727 = vsel %vm634, %v725, 0.0
          %v728 = vsel %vm634, %v726, 0.0
          %v729 = vadd.f32 %v727, %v728
          %730 = vadd.xlane.f32.xlu0 %v729
          %v731 = vpop.xlane.xlu0 %730
          %v732 = vadd.f32 %v724, %v731
          %733 = vst.msk [vmem:[#allocation3] sm:$0xf] %vm722, %v732
        $region64: #{tpu_custom_call.1} parent=51 // pred_fallthru
          _
        %p734 = scmp.gt.s32.totalorder %s27, 0
        // Predicated region
        $region65: #{tpu_custom_call.1} parent=51 // pred_check
          %p735 = pneg %p734
        $region66: #{tpu_custom_call.1} parent=51 // pred_check_branch
          %737 = sbr.rel (%p735) target = $region68
        $region67: #{tpu_custom_call.1} parent=51 // pred_region
          %v738 = vld [vmem:[#allocation2] sm:$0xf]
          %v739 = vrcp.pop 512.0
          %v740 = vmul.f32 %v738, %v739
          %v741 = vld [vmem:[#allocation3] sm:$0xf]
          %v742 = vmul.f32 %v741, %v739
          %v743 = vmul.f32 %v740, %v740
          %v744 = vsub.f32 %v742, %v743
          %746 = vset.pattern.permute.xlu0 0
          %747 = vperm.xlu0 %746, %v740
          %v748 = vpop.permute.xlu0 %747
          %v750 = vsub.f32 %v708, %v748
          %v751 = vsub.f32 %v710, %v748
          %v752 = vadd.f32 %v744, 1e-05
          %v753 = vrsqrt.pop %v752
          %755 = vset.pattern.permute.xlu0 0
          %756 = vperm.xlu0 %755, %v753
          %v757 = vpop.permute.xlu0 %756
          %v759 = vmul.f32 %v750, %v757
          %v760 = vmul.f32 %v751, %v757
          %v761 = vld [vmem:[%s3] sm:$0xf]
          %763 = vset.pattern.permute.xlu0 0
          %764 = vperm.xlu0 %763, %v761
          %v765 = vpop.permute.xlu0 %764
          %v767 = vmul.f32 %v759, %v765
          %v768 = vmul.f32 %v760, %v765
          %v769 = vld [vmem:[%s4] sm:$0xf]
          %771 = vset.pattern.permute.xlu0 0
          %772 = vperm.xlu0 %771, %v769
          %v773 = vpop.permute.xlu0 %772
          %v775 = vadd.f32 %v767, %v773
          %v776 = vadd.f32 %v768, %v773
          %v777 = vmax.f32 %v775, 0.0
          %v778 = vmax.f32 %v776, 0.0
          %v779 = vld [vmem:[#allocation7] ss:$8 sm:$0x3]
          %v781 = vlaneseq
          %v782 = vshrl.u32 %v781, 7
          %v783 = vsub.s32 0, %v782
          %v784 = vrot.slane %v779, %v783
          %v785 = vlaneseq
          %v786 = vshrl.u32 %v785, 7
          %v787 = vsub.s32 1, %v786
          %v788 = vrot.slane %v779, %v787
          %789 = vrot.lane.b32.xlu0 %v784, 111
          %v790 = vpop.permute.xlu0 %789
          %791 = vrot.lane.b32.xlu0 %v788, 111
          %v792 = vpop.permute.xlu0 %791
          %v793 = vsel %vm367, %v790, %v792
          %v796 = vmul.f32 %v777, %v793
          %v797 = vmul.f32 %v778, %v792
          %800 = vrot.lane.b32.xlu0 %v796, 17
          %v801 = vpop.permute.xlu0 %800
          %802 = vrot.lane.b32.xlu0 %v797, 17
          %v803 = vpop.permute.xlu0 %802
          %v804 = vsel %vm377, %v801, %v803
          %807 = vst.msk [vmem:[#allocation6] sm:$0xf] %vm381, %v801
          %808 = vst [vmem:[#allocation6 + $0x8] sm:$0xf] %v804
          %v809 = vld [vmem:[%s384] ss:$8 sm:$0x3]
          %v811 = vlaneseq
          %v812 = vshrl.u32 %v811, 7
          %v813 = vsub.s32 0, %v812
          %v814 = vrot.slane %v809, %v813
          %v815 = vlaneseq
          %v816 = vshrl.u32 %v815, 7
          %v817 = vsub.s32 1, %v816
          %v818 = vrot.slane %v809, %v817
          %819 = vrot.lane.b32.xlu0 %v814, 112
          %v820 = vpop.permute.xlu0 %819
          %821 = vrot.lane.b32.xlu0 %v818, 112
          %v822 = vpop.permute.xlu0 %821
          %v823 = vsel %vm399, %v820, %v822
          %v826 = vmul.f32 %v777, %v823
          %v827 = vmul.f32 %v778, %v822
          %v830 = vrot.slane %v826, 4
          %v831 = vrot.slane %v827, 4
          %832 = vrot.lane.b32.xlu0 %v830, 16
          %v833 = vpop.permute.xlu0 %832
          %834 = vrot.lane.b32.xlu0 %v831, 16
          %v835 = vpop.permute.xlu0 %834
          %v836 = vsel %vm409, %v833, %v835
          %839 = vst.msk [vmem:[#allocation6] sm:$0xf0] %vm413, %v833
          %840 = vst [vmem:[#allocation6 + $0x8] sm:$0xf0] %v836
          %v841 = vld [vmem:[%s416] ss:$8 sm:$0x3]
          %v843 = vlaneseq
          %v844 = vshrl.u32 %v843, 7
          %v845 = vsub.s32 0, %v844
          %v846 = vrot.slane %v841, %v845
          %v847 = vlaneseq
          %v848 = vshrl.u32 %v847, 7
          %v849 = vsub.s32 1, %v848
          %v850 = vrot.slane %v841, %v849
          %851 = vrot.lane.b32.xlu0 %v846, 113
          %v852 = vpop.permute.xlu0 %851
          %853 = vrot.lane.b32.xlu0 %v850, 113
          %v854 = vpop.permute.xlu0 %853
          %v855 = vsel %vm431, %v852, %v854
          %v858 = vmul.f32 %v777, %v855
          %v859 = vmul.f32 %v778, %v854
          %862 = vrot.lane.b32.xlu0 %v858, 15
          %v863 = vpop.permute.xlu0 %862
          %864 = vrot.lane.b32.xlu0 %v859, 15
          %v865 = vpop.permute.xlu0 %864
          %v866 = vsel %vm441, %v863, %v865
          %869 = vst.msk [vmem:[#allocation6 + $0x10] sm:$0xf] %vm445, %v863
          %870 = vst [vmem:[#allocation6 + $0x18] sm:$0xf] %v866
          %v871 = vld [vmem:[%s448] ss:$8 sm:$0x3]
          %v873 = vlaneseq
          %v874 = vshrl.u32 %v873, 7
          %v875 = vsub.s32 0, %v874
          %v876 = vrot.slane %v871, %v875
          %v877 = vlaneseq
          %v878 = vshrl.u32 %v877, 7
          %v879 = vsub.s32 1, %v878
          %v880 = vrot.slane %v871, %v879
          %881 = vrot.lane.b32.xlu0 %v876, 127
          %v882 = vpop.permute.xlu0 %881
          %883 = vrot.lane.b32.xlu0 %v880, 127
          %v884 = vpop.permute.xlu0 %883
          %v885 = vsel %vm463, %v882, %v884
          %v888 = vmul.f32 %v777, %v885
          %v889 = vmul.f32 %v778, %v884
          %v892 = vrot.slane %v888, 4
          %v893 = vrot.slane %v889, 4
          %894 = vrot.lane.b32.xlu0 %v892, 1
          %v895 = vpop.permute.xlu0 %894
          %896 = vrot.lane.b32.xlu0 %v893, 1
          %v897 = vpop.permute.xlu0 %896
          %v898 = vsel %vm473, %v895, %v897
          %901 = vst.msk [vmem:[#allocation6 + $0x10] sm:$0xf0] %vm477, %v895
          %902 = vst [vmem:[#allocation6 + $0x18] sm:$0xf0] %v898
          %v903 = vld [vmem:[%s480] ss:$8 sm:$0x3]
          %v905 = vlaneseq
          %v906 = vshrl.u32 %v905, 7
          %v907 = vsub.s32 0, %v906
          %v908 = vrot.slane %v903, %v907
          %v909 = vlaneseq
          %v910 = vshrl.u32 %v909, 7
          %v911 = vsub.s32 1, %v910
          %v912 = vrot.slane %v903, %v911
          %v915 = vmul.f32 %v777, %v908
          %v916 = vmul.f32 %v778, %v912
          %917 = vst [vmem:[#allocation6 + $0x20] sm:$0xf] %v915
          %918 = vst [vmem:[#allocation6 + $0x28] sm:$0xf] %v916
          %v919 = vld [vmem:[%s499] ss:$8 sm:$0x3]
          %v921 = vlaneseq
          %v922 = vshrl.u32 %v921, 7
          %v923 = vsub.s32 0, %v922
          %v924 = vrot.slane %v919, %v923
          %v925 = vlaneseq
          %v926 = vshrl.u32 %v925, 7
          %v927 = vsub.s32 1, %v926
          %v928 = vrot.slane %v919, %v927
          %929 = vrot.lane.b32.xlu0 %v924, 1
          %v930 = vpop.permute.xlu0 %929
          %931 = vrot.lane.b32.xlu0 %v928, 1
          %v932 = vpop.permute.xlu0 %931
          %v933 = vsel %vm473, %v930, %v932
          %v936 = vmul.f32 %v777, %v930
          %v937 = vmul.f32 %v778, %v933
          %v940 = vrot.slane %v936, 4
          %v941 = vrot.slane %v937, 4
          %942 = vrot.lane.b32.xlu0 %v940, 127
          %v943 = vpop.permute.xlu0 %942
          %944 = vrot.lane.b32.xlu0 %v941, 127
          %v945 = vpop.permute.xlu0 %944
          %v946 = vsel %vm463, %v943, %v945
          %949 = vst [vmem:[#allocation6 + $0x20] sm:$0xf0] %v946
          %950 = vst.msk [vmem:[#allocation6 + $0x28] sm:$0xf0] %vm527, %v945
          %v951 = vld [vmem:[%s529] ss:$8 sm:$0x3]
          %v953 = vlaneseq
          %v954 = vshrl.u32 %v953, 7
          %v955 = vsub.s32 0, %v954
          %v956 = vrot.slane %v951, %v955
          %v957 = vlaneseq
          %v958 = vshrl.u32 %v957, 7
          %v959 = vsub.s32 1, %v958
          %v960 = vrot.slane %v951, %v959
          %961 = vrot.lane.b32.xlu0 %v956, 15
          %v962 = vpop.permute.xlu0 %961
          %963 = vrot.lane.b32.xlu0 %v960, 15
          %v964 = vpop.permute.xlu0 %963
          %v965 = vsel %vm441, %v962, %v964
          %v968 = vmul.f32 %v777, %v962
          %v969 = vmul.f32 %v778, %v965
          %972 = vrot.lane.b32.xlu0 %v968, 113
          %v973 = vpop.permute.xlu0 %972
          %974 = vrot.lane.b32.xlu0 %v969, 113
          %v975 = vpop.permute.xlu0 %974
          %v976 = vsel %vm431, %v973, %v975
          %979 = vst [vmem:[#allocation6 + $0x30] sm:$0xf] %v976
          %980 = vst.msk [vmem:[#allocation6 + $0x38] sm:$0xf] %vm557, %v975
          %v981 = vld [vmem:[%s559] ss:$8 sm:$0x3]
          %v983 = vlaneseq
          %v984 = vshrl.u32 %v983, 7
          %v985 = vsub.s32 0, %v984
          %v986 = vrot.slane %v981, %v985
          %v987 = vlaneseq
          %v988 = vshrl.u32 %v987, 7
          %v989 = vsub.s32 1, %v988
          %v990 = vrot.slane %v981, %v989
          %991 = vrot.lane.b32.xlu0 %v986, 16
          %v992 = vpop.permute.xlu0 %991
          %993 = vrot.lane.b32.xlu0 %v990, 16
          %v994 = vpop.permute.xlu0 %993
          %v995 = vsel %vm409, %v992, %v994
          %v998 = vmul.f32 %v777, %v992
          %v999 = vmul.f32 %v778, %v995
          %v1002 = vrot.slane %v998, 4
          %v1003 = vrot.slane %v999, 4
          %1004 = vrot.lane.b32.xlu0 %v1002, 112
          %v1005 = vpop.permute.xlu0 %1004
          %1006 = vrot.lane.b32.xlu0 %v1003, 112
          %v1007 = vpop.permute.xlu0 %1006
          %v1008 = vsel %vm399, %v1005, %v1007
          %1011 = vst [vmem:[#allocation6 + $0x30] sm:$0xf0] %v1008
          %1012 = vst.msk [vmem:[#allocation6 + $0x38] sm:$0xf0] %vm587, %v1007
          %v1013 = vld [vmem:[%s589] ss:$8 sm:$0x3]
          %v1015 = vlaneseq
          %v1016 = vshrl.u32 %v1015, 7
          %v1017 = vsub.s32 0, %v1016
          %v1018 = vrot.slane %v1013, %v1017
          %v1019 = vlaneseq
          %v1020 = vshrl.u32 %v1019, 7
          %v1021 = vsub.s32 1, %v1020
          %v1022 = vrot.slane %v1013, %v1021
          %1023 = vrot.lane.b32.xlu0 %v1018, 17
          %v1024 = vpop.permute.xlu0 %1023
          %1025 = vrot.lane.b32.xlu0 %v1022, 17
          %v1026 = vpop.permute.xlu0 %1025
          %v1027 = vsel %vm377, %v1024, %v1026
          %v1030 = vmul.f32 %v777, %v1024
          %v1031 = vmul.f32 %v778, %v1027
          %1034 = vrot.lane.b32.xlu0 %v1030, 111
          %v1035 = vpop.permute.xlu0 %1034
          %1036 = vrot.lane.b32.xlu0 %v1031, 111
          %v1037 = vpop.permute.xlu0 %1036
          %v1038 = vsel %vm367, %v1035, %v1037
          %1041 = vst [vmem:[#allocation6 + $0x40] sm:$0xf] %v1038
          %1042 = vst.msk [vmem:[#allocation6 + $0x48] sm:$0xf] %vm617, %v1037
          %v1043 = vld [vmem:[%s5] sm:$0xf]
          %v1044 = vld [vmem:[#allocation6] sm:$0xff]
          %v1045 = vld [vmem:[#allocation6 + $0x8] sm:$0xff]
          %v1046 = vld [vmem:[#allocation6 + $0x10] sm:$0xff]
          %v1047 = vld [vmem:[#allocation6 + $0x18] sm:$0xff]
          %v1048 = vld [vmem:[#allocation6 + $0x20] sm:$0xff]
          %v1049 = vld [vmem:[#allocation6 + $0x28] sm:$0xff]
          %v1050 = vld [vmem:[#allocation6 + $0x30] sm:$0xff]
          %v1051 = vld [vmem:[#allocation6 + $0x38] sm:$0xff]
          %v1052 = vld [vmem:[#allocation6 + $0x40] sm:$0xf]
          %v1053 = vld [vmem:[#allocation6 + $0x48] sm:$0xf]
          %v1055 = vsel %vm630, %v1043, 0
          %v1058 = vsel %vm634, %v1052, 0
          %v1061 = vsel %vm634, %v1053, 0
          %1063 = vmatprep.subr.mxu0 %v1045
          %1064 = vmatpush1.msra.mxu0 %v1044
          %1065 = vmatprep.subr.mxu0 %v1047
          %1066 = vmatpush1.msra.mxu0 %v1046
          %1067 = vmatprep.subr.mxu0 %v1049
          %1068 = vmatpush1.msra.mxu0 %v1048
          %1069 = vmatprep.subr.mxu0 %v1051
          %1070 = vmatpush1.msra.mxu0 %v1050
          %1071 = vmatprep.subr.mxu0 %v1061
          %1072 = vmatpush1.msra.mxu0 %v1058
          %1073 = vmatprep.subr.mxu0 0.0
          %1074 = vmatpush1.msra.mxu0 0.0
          %1075 = vmatprep.subr.mxu0 0.0
          %1076 = vmatpush1.msra.mxu0 0.0
          %1077 = vmatprep.subr.mxu0 0.0
          %1078 = vmatpush1.msra.mxu0 0.0
          %1079 = vmatprep.subr.mxu0 0.0
          %1080 = vmatpush1.msra.mxu0 0.0
          %1081 = vmatprep.subr.mxu0 0.0
          %1082 = vmatpush1.msra.mxu0 0.0
          %1083 = vmatprep.subr.mxu0 0.0
          %1084 = vmatpush1.msra.mxu0 0.0
          %1085 = vmatprep.subr.mxu0 0.0
          %1086 = vmatpush1.msra.mxu0 0.0
          %1087 = vmatprep.subr.mxu0 0.0
          %1088 = vmatpush1.msra.mxu0 0.0
          %1089 = vmatprep.subr.mxu0 0.0
          %1090 = vmatpush1.msra.mxu0 0.0
          %1091 = vmatprep.subr.mxu0 0.0
          %1092 = vmatpush1.msra.mxu0 0.0
          %1093 = vmatprep.subr.mxu0 0.0
          %1094 = vmatpush1.msra.mxu0 0.0
          %1095 = vmatprep.subr.mxu0 0.0
          %1096 = vmatpush1.msra.mxu0 0.0
          %1097 = vmatprep.subr.mxu0 0.0
          %1098 = vmatpush1.msra.mxu0 0.0
          %1099 = vmatprep.subr.mxu0 0.0
          %1100 = vmatpush1.msra.mxu0 0.0
          %1101 = vmatprep.subr.mxu0 0.0
          %1102 = vmatpush1.msra.mxu0 0.0
          %1103 = vmatprep.subr.mxu0 0.0
          %1104 = vmatpush1.msra.mxu0 0.0
          %1105 = vmatprep.subr.mxu0 0.0
          %1106 = vmatpush1.msra.mxu0 0.0
          %1107 = vmatprep.subr.mxu0 0.0
          %1108 = vmatpush1.msra.mxu0 0.0
          %1109 = vmatprep.subr.mxu0 0.0
          %1110 = vmatpush1.msra.mxu0 0.0
          %1111 = vmatprep.subr.mxu0 0.0
          %1112 = vmatpush1.msra.mxu0 0.0
          %1113 = vmatprep.subr.mxu0 0.0
          %1114 = vmatpush1.msra.mxu0 0.0
          %1115 = vmatprep.subr.mxu0 0.0
          %1116 = vmatpush1.msra.mxu0 0.0
          %1117 = vmatprep.subr.mxu0 0.0
          %1118 = vmatpush1.msra.mxu0 0.0
          %1119 = vmatprep.subr.mxu0 0.0
          %1120 = vmatpush1.msra.mxu0 0.0
          %1121 = vmatprep.subr.mxu0 0.0
          %1122 = vmatpush1.msra.mxu0 0.0
          %1123 = vmatprep.subr.mxu0 0.0
          %1124 = vmatpush1.msra.mxu0 0.0
          %1125 = vmatprep.subr.mxu0 0.0
          %1126 = vmatpush1.msra.mxu0 0.0
          %1127 = vmatprep.mubr.f32.mxu0 0.0
          %1128 = vmatmul.mubr.f32.gmra.mrb[0].mxu0 %v1055
          %v1129 = vpop.f32.mrb[0].mxu0
          %v1130 = vadd.f32 0.0, %v1129
          %v1131 = vpop.f32.mrb[0].mxu0
          %v1132 = vadd.f32 0.0, %v1131
          %1133 = vdwg.mxu0
          %p1134 = scmp.eq.s32.totalorder %s27, 1
          // Predicated region
          $region69: #{tpu_custom_call.1} parent=67 // pred_check
            %p1135 = pneg %p1134
          $region70: #{tpu_custom_call.1} parent=67 // pred_check_branch
            %1137 = sbr.rel (%p1135) target = $region72
          $region71: #{tpu_custom_call.1} parent=67 // pred_region
            %v1138 = vld [vmem:[#allocation4] sm:$0xf]
            %v1139 = vsel %vm634, %v1130, 0.0
            %v1140 = vsel %vm634, %v1132, 0.0
            %v1141 = vadd.f32 %v1139, %v1140
            %1142 = vadd.xlane.f32.xlu0 %v1141
            %v1143 = vpop.xlane.xlu0 %1142
            %v1144 = vadd.f32 %v1138, %v1143
            %vm1145 = vcmask 3072
            %1146 = vst.msk [vmem:[#allocation4] sm:$0xf] %vm1145, %v1144
            %v1147 = vld [vmem:[#allocation5] sm:$0xf]
            %v1148 = vmul.f32 %v1130, %v1130
            %v1149 = vmul.f32 %v1132, %v1132
            %v1150 = vsel %vm634, %v1148, 0.0
            %v1151 = vsel %vm634, %v1149, 0.0
            %v1152 = vadd.f32 %v1150, %v1151
            %1153 = vadd.xlane.f32.xlu0 %v1152
            %v1154 = vpop.xlane.xlu0 %1153
            %v1155 = vadd.f32 %v1147, %v1154
            %1156 = vst.msk [vmem:[#allocation5] sm:$0xf] %vm1145, %v1155
          $region72: #{tpu_custom_call.1} parent=67 // pred_fallthru
            _
          %p1157 = scmp.eq.s32.totalorder %s27, 2
          // Predicated region
          $region73: #{tpu_custom_call.1} parent=67 // pred_check
            %p1158 = pneg %p1157
          $region74: #{tpu_custom_call.1} parent=67 // pred_check_branch
            %1160 = sbr.rel (%p1158) target = $region76
          $region75: #{tpu_custom_call.1} parent=67 // pred_region
            %v1161 = vld [vmem:[#allocation4] sm:$0xf]
            %v1162 = vmul.f32 %v1161, %v739
            %v1163 = vld [vmem:[#allocation5] sm:$0xf]
            %v1164 = vmul.f32 %v1163, %v739
            %v1165 = vmul.f32 %v1162, %v1162
            %v1166 = vsub.f32 %v1164, %v1165
            %1168 = vset.pattern.permute.xlu0 0
            %1169 = vperm.xlu0 %1168, %v1162
            %v1170 = vpop.permute.xlu0 %1169
            %v1172 = vsub.f32 %v1130, %v1170
            %v1173 = vsub.f32 %v1132, %v1170
            %v1174 = vadd.f32 %v1166, 1e-05
            %v1175 = vrsqrt.pop %v1174
            %1177 = vset.pattern.permute.xlu0 0
            %1178 = vperm.xlu0 %1177, %v1175
            %v1179 = vpop.permute.xlu0 %1178
            %v1181 = vmul.f32 %v1172, %v1179
            %v1182 = vmul.f32 %v1173, %v1179
            %v1183 = vld [vmem:[%s6] sm:$0xf]
            %1185 = vset.pattern.permute.xlu0 0
            %1186 = vperm.xlu0 %1185, %v1183
            %v1187 = vpop.permute.xlu0 %1186
            %v1189 = vmul.f32 %v1181, %v1187
            %v1190 = vmul.f32 %v1182, %v1187
            %v1191 = vld [vmem:[%s7] sm:$0xf]
            %1193 = vset.pattern.permute.xlu0 0
            %1194 = vperm.xlu0 %1193, %v1191
            %v1195 = vpop.permute.xlu0 %1194
            %v1197 = vadd.f32 %v1189, %v1195
            %v1198 = vadd.f32 %v1190, %v1195
            %v1200 = vcombine.high %v352, %v352
            %v1202 = vadd.f32 %v1197, %v352
            %v1203 = vadd.f32 %v1198, %v1200
            %v1204 = vmax.f32 %v1202, 0.0
            %v1205 = vmax.f32 %v1203, 0.0
            %v1208 = vcombine.low %v1204, %v1205
            %1210 = vst [vmem:[%s325] sm:$0xff] %v1208
          $region76: #{tpu_custom_call.1} parent=67 // pred_fallthru
            _
        $region68: #{tpu_custom_call.1} parent=51 // pred_fallthru
          _
        %s1211 = sand.u32 %s216, 1
        %s1212 = scalar_lea.sflag [#allocation9], %s1211
        %s1213 = sand.u32 %s216, 1
        %s1214 = smul.addr %s1213, 8
        %s1215 = scalar_lea.vmem [#allocation10], %s1214
        // Predicated region
        $region77: #{tpu_custom_call.1} parent=51 // pred_check
          %p1216 = pneg %p226
        $region78: #{tpu_custom_call.1} parent=51 // pred_check_branch
          %1218 = sbr.rel (%p1216) target = $region80
        $region79: #{tpu_custom_call.1} parent=51 // pred_region
          %s1220 = ssub.s32 128, 128
          %1221 = vsyncadd %s1212, %s1220
          %s1222 = smul.addr %s28, 2
          %s1223 = smul.addr %s1222, 64
          %s1224 = scalar_lea.hbm %s8, %s1223
          %s1226 = sshll.u32 %s1215, 4
          %s1227 = int_to_ptr.vmem [resolvable:$true] %s1226
          %1229 = dma.vmem_to_hbm [thread:$0]  %s1227, 128, %s1224, %s1212
        $region80: #{tpu_custom_call.1} parent=51 // pred_fallthru
          _
      $region52: #{tpu_custom_call.1} parent=5 // pred_fallthru
        _
      %p1230 = scmp.le.s32.totalorder 2, %s18
      // Predicated region
      $region81: #{tpu_custom_call.1} parent=5 // pred_check
        %p1231 = pneg %p1230
      $region82: #{tpu_custom_call.1} parent=5 // pred_check_branch
        %1233 = sbr.rel (%p1231) target = $region84
      $region83: #{tpu_custom_call.1} parent=5 // pred_region
        %s1234 = ssub.s32 %s18, 2
        // Predicated region
        $region85: #{tpu_custom_call.1} parent=83 // pred_check
          %p1235 = pneg %p232
        $region86: #{tpu_custom_call.1} parent=83 // pred_check_branch
          %1237 = sbr.rel (%p1235) target = $region88
        $region87: #{tpu_custom_call.1} parent=83 // pred_region
          %s1238 = sand.u32 %s217, 1
          %s1239 = scalar_lea.sflag [#allocation9], %s1238
          %s1240 = sand.u32 %s217, 1
          %s1241 = smul.addr %s1240, 8
          %s1242 = scalar_lea.vmem [#allocation10], %s1241
          %1243 = dma.done %s1239, 128
        $region88: #{tpu_custom_call.1} parent=83 // pred_fallthru
          _
      $region84: #{tpu_custom_call.1} parent=5 // pred_fallthru
        _
    $region6: #{tpu_custom_call.1} parent=1 // loop_footer
      %s22 = sadd.s32 1, %s18
    $region7: #{tpu_custom_call.1} parent=1 // loop_footer_branch
      %17 = sbr.rel target = $region3
    $region8: #{tpu_custom_call.1} parent=1 // loop_exit
      _
    %1244 = vsyncpa [#allocation8], 1
    %s1245 = scalar_lea.sflag [#allocation8], 1
    %1246 = vsyncpa %s1245, 1
    %1247 = vsyncpa [#allocation9], 1
    %s1248 = scalar_lea.sflag [#allocation9], 1
    %1249 = vsyncpa %s1248, 1

</llo_original>
